<compile_context>
chip_gen: v7x
topology: tpu7x:2x2x1
jax: 0.10.0
libtpu: 0.0.40
codegen_flags: <defaults>
</compile_context>

<pallas_src>
import jax
import jax.numpy as jnp
from jax.experimental import pallas as pl
from jax.experimental.pallas import tpu as pltpu

# Model hyperparameters (small, consistent with the module's forward pass)
B = 2        # batch
T = 8        # target (decoder) sequence length
S = 8        # source (encoder) sequence length
D = 32       # model dim (size)
H = 4        # attention heads
DK = D // H  # per-head dim
DFF = 64     # feed-forward hidden dim
EPS = 1e-5   # nn.LayerNorm default eps


def decoder_layer_kernel(x_ref, enc_ref, mask_ref, vec_ref, wa_ref, w2_ref, out_ref):
    """Processes a block of `nb` batch elements (nb=B on 1-TC chips, nb=1 when
    the batch grid axis is sharded across TensorCores)."""
    nb = x_ref.shape[0]
    x = x_ref[...]                       # (nb, T, D)
    enc = enc_ref[...]                   # (nb, S, D)
    mask = mask_ref[...]                 # (nb, 1, S)  float; 0 => masked

    # ---- unpack the (8, 128) scale/bias slab (one f32 vreg tile) ----
    vec = vec_ref[...]
    ln1_g, ln1_b = vec[0:1, :D], vec[1:2, :D]
    ln2_g, ln2_b = vec[2:3, :D], vec[3:4, :D]
    bq = vec[4:5, :D]
    bkv = vec[5:6, :2 * D]
    b1 = vec[6:7, :DFF]
    bo = vec[7:8, :D]
    b2 = vec[7:8, D:2 * D]

    # ---- lane-packed weight slab: [wq | wk | wv | wo | w1], all D rows ----
    wq = wa_ref[:, 0:D]                  # (D, D)
    wkv = wa_ref[:, D:3 * D]             # (D, 2D)  == [wk | wv]
    wo = wa_ref[:, 3 * D:4 * D]          # (D, D)
    w1 = wa_ref[:, 4 * D:4 * D + DFF]    # (D, DFF)
    w2 = w2_ref[...]                     # (DFF, D)

    def layer_norm(v, g, b):
        mu = jnp.mean(v, axis=-1, keepdims=True)
        var = jnp.mean((v - mu) ** 2, axis=-1, keepdims=True)
        return (v - mu) * jax.lax.rsqrt(var + EPS) * g + b

    # ---- sublayer[0]: x + cross_attn(norm(x), enc, enc, mask)  (dropout = id) ----
    xn = layer_norm(x, ln1_g, ln1_b)                                    # (nb, T, D)

    # Lane-dense 2-D projections (one MXU pass each; no per-head broadcasts).
    q2 = jnp.dot(xn.reshape(nb * T, D), wq,
                 preferred_element_type=jnp.float32) + bq               # (nb*T, D)
    kv2 = jnp.dot(enc.reshape(nb * S, D), wkv,
                  preferred_element_type=jnp.float32) + bkv             # (nb*S, 2D)

    # Head-major views only for the attention core (per-head DK contraction).
    def to_heads(a2, n):  # (nb*n, H*DK) -> (nb*H, n, DK)
        return a2.reshape(nb, n, H, DK).transpose(0, 2, 1, 3).reshape(nb * H, n, DK)

    q_bh = to_heads(q2, T)                                              # (nb*H, T, DK)
    k_bh = to_heads(kv2[:, :D], S)                                      # (nb*H, S, DK)
    v_bh = to_heads(kv2[:, D:], S)                                      # (nb*H, S, DK)

    s = jnp.einsum('bqd,bkd->bqk', q_bh, k_bh,
                   preferred_element_type=jnp.float32) * (1.0 / (DK ** 0.5))
    s = s.reshape(nb, H, T, S)
    s = jnp.where(mask[:, None] == 0.0, -1e9, s)     # masked_fill(mask == 0, -1e9)
    s = s.reshape(nb * H, T, S)
    s = s - jnp.max(s, axis=-1, keepdims=True)
    p = jnp.exp(s)
    p = p / jnp.sum(p, axis=-1, keepdims=True)       # exact divide (32-elem denom)

    o_bh = jnp.einsum('bqk,bkd->bqd', p, v_bh,
                      preferred_element_type=jnp.float32)               # (nb*H, T, DK)
    # Lane-concatenate the heads; output projection as one (nb*T,D)@(D,D) matmul.
    o2 = o_bh.reshape(nb, H, T, DK).transpose(0, 2, 1, 3).reshape(nb * T, H * DK)
    attn = jnp.dot(o2, wo, preferred_element_type=jnp.float32) + bo     # (nb*T, D)
    x1 = x + attn.reshape(nb, T, D)

    # ---- sublayer[1]: x1 + feed_forward(norm(x1)) ----
    xn2 = layer_norm(x1, ln2_g, ln2_b).reshape(nb * T, D)
    h1 = jnp.maximum(
        jnp.dot(xn2, w1, preferred_element_type=jnp.float32) + b1, 0.0)
    ff = jnp.dot(h1, w2, preferred_element_type=jnp.float32) + b2
    out_ref[...] = (x1 + ff.reshape(nb, T, D)).astype(out_ref.dtype)


def pack_params(params):
    """Repack the 16 canonical parameters into 3 lane-friendly slabs:
       vec (8,128): LN scales/biases + all 1-D biases (one f32 vreg tile);
       wa  (D, 4D+DFF): [wq | wk | wv | wo | w1] lane-concatenated;
       w2  (DFF, D)."""
    (ln1_g, ln1_b, wq, bq, wk, bk, wv, bv, wo, bo,
     ln2_g, ln2_b, w1, b1, w2, b2) = params
    assert D <= 128 and 2 * D <= 128 and DFF <= 128
    vec = jnp.zeros((8, 128), jnp.float32)
    vec = vec.at[0, :D].set(ln1_g.reshape(-1))
    vec = vec.at[1, :D].set(ln1_b.reshape(-1))
    vec = vec.at[2, :D].set(ln2_g.reshape(-1))
    vec = vec.at[3, :D].set(ln2_b.reshape(-1))
    vec = vec.at[4, :D].set(bq.reshape(-1))
    vec = vec.at[5, :2 * D].set(jnp.concatenate([bk.reshape(-1), bv.reshape(-1)]))
    vec = vec.at[6, :DFF].set(b1.reshape(-1))
    vec = vec.at[7, :D].set(bo.reshape(-1))
    vec = vec.at[7, D:2 * D].set(b2.reshape(-1))
    wa = jnp.concatenate([wq, wk, wv, wo, w1], axis=-1)   # (D, 4D + DFF)
    return vec, wa, w2


def _block_batch():
    """Batch elements per grid step.  Single-TensorCore chips (v5e/v6e/v2/v3):
    fold the whole batch into one grid step.  Multi-TC chips (v4/v5p megacore,
    v7x): one element per step so the 'parallel' axis can span TensorCores."""
    try:
        kind = jax.devices()[0].device_kind.lower()
    except Exception:
        return B
    multi_tc = any(t in kind for t in ("v4", "v5p", "v7"))
    return 1 if multi_tc else B


def decoder_layer(x, enc, mask, params):
    vec, wa, w2 = pack_params(params)
    nb = _block_batch()
    grid = (B // nb,)

    def const_spec(arr):
        n = arr.ndim
        # Constant block index: Pallas does not re-DMA these between grid steps
        # (and with the batch folded there is only one step), so no extra
        # buffering control is needed here.
        return pl.BlockSpec(arr.shape, lambda b, n=n: (0,) * n)

    in_specs = [
        pl.BlockSpec((nb, T, D), lambda b: (b, 0, 0)),   # x
        pl.BlockSpec((nb, S, D), lambda b: (b, 0, 0)),   # enc_output
        pl.BlockSpec((nb, 1, S), lambda b: (b, 0, 0)),   # src_mask
        const_spec(vec), const_spec(wa), const_spec(w2),
    ]

    return pl.pallas_call(
        decoder_layer_kernel,
        out_shape=jax.ShapeDtypeStruct((B, T, D), x.dtype),
        grid_spec=pltpu.PrefetchScalarGridSpec(
            num_scalar_prefetch=0,
            grid=grid,
            in_specs=in_specs,
            out_specs=pl.BlockSpec((nb, T, D), lambda b: (b, 0, 0)),
        ),
        # TODO(synk): profile on v7x to confirm the B=2 "parallel" axis really
        # shards across both TensorCores; if not, switch to pltpu.CORE_PARALLEL
        # or an explicit pl.core_map over create_tensorcore_mesh.
        compiler_params=pltpu.CompilerParams(
            dimension_semantics=("parallel",)),
    )(x, enc, mask, vec, wa, w2)


def make_params(key):
    ks = jax.random.split(key, 8)

    def nrm(k, shape, scale=0.1):
        return (scale * jax.random.normal(k, shape)).astype(jnp.float32)

    return [
        jnp.ones((1, D), jnp.float32),   # ln1_g
        jnp.zeros((1, D), jnp.float32),  # ln1_b
        nrm(ks[0], (D, D)), jnp.zeros((1, D), jnp.float32),      # wq, bq
        nrm(ks[1], (D, D)), jnp.zeros((1, D), jnp.float32),      # wk, bk
        nrm(ks[2], (D, D)), jnp.zeros((1, D), jnp.float32),      # wv, bv
        nrm(ks[3], (D, D)), jnp.zeros((1, D), jnp.float32),      # wo, bo
        jnp.ones((1, D), jnp.float32),   # ln2_g
        jnp.zeros((1, D), jnp.float32),  # ln2_b
        nrm(ks[4], (D, DFF)), jnp.zeros((1, DFF), jnp.float32),  # w1, b1
        nrm(ks[5], (DFF, D)), jnp.zeros((1, D), jnp.float32),    # w2, b2
    ]


def ref_decoder_layer(x, enc, mask, p):
    (ln1_g, ln1_b, wq, bq, wk, bk, wv, bv, wo, bo,
     ln2_g, ln2_b, w1, b1, w2, b2) = p

    def ln(v, g, b):
        mu = v.mean(-1, keepdims=True)
        var = ((v - mu) ** 2).mean(-1, keepdims=True)
        return (v - mu) / jnp.sqrt(var + EPS) * g + b

    xn = ln(x, ln1_g, ln1_b)
    q = xn @ wq + bq
    k = enc @ wk + bk
    v = enc @ wv + bv
    qh = q.reshape(B, T, H, DK).transpose(0, 2, 1, 3)
    kh = k.reshape(B, S, H, DK).transpose(0, 2, 1, 3)
    vh = v.reshape(B, S, H, DK).transpose(0, 2, 1, 3)
    s = jnp.einsum('bhtd,bhsd->bhts', qh, kh) / jnp.sqrt(jnp.float32(DK))
    s = jnp.where(mask[:, None, :, :] == 0, -1e9, s)
    pat = jax.nn.softmax(s, axis=-1)
    o = jnp.einsum('bhts,bhsd->bhtd', pat, vh).transpose(0, 2, 1, 3).reshape(B, T, D)
    x1 = x + (o @ wo + bo)
    xn2 = ln(x1, ln2_g, ln2_b)
    ff = jnp.maximum(xn2 @ w1 + b1, 0.0) @ w2 + b2
    return x1 + ff


if __name__ == "__main__":
    key = jax.random.PRNGKey(0)
    kx, ke, kp = jax.random.split(key, 3)
    x = jax.random.normal(kx, (B, T, D), jnp.float32)
    enc = jax.random.normal(ke, (B, S, D), jnp.float32)
    # src_mask: 1 = attend, 0 = masked. Mask out last 2 source positions of batch 1.
    mask = jnp.ones((B, 1, S), jnp.float32).at[1, 0, S - 2:].set(0.0)

    params = make_params(kp)

    out = jax.block_until_ready(decoder_layer(x, enc, mask, params))
    ref = ref_decoder_layer(x, enc, mask, params)
    assert out.shape == (B, T, D)
    # Softmax denominator is an exact divide now; remaining slack only covers
    # MXU-vs-XLA f32 matmul rounding differences.
    assert jnp.allclose(out, ref, rtol=5e-4, atol=5e-4), \
        f"max err {jnp.max(jnp.abs(out - ref))}"
    print("KERNEL_OK")
</pallas_src>

<mosaic_0001>
module attributes {stable_mosaic.version = 11 : i64} {
  func.func @decoder_layer_kernel(%arg0: i32, %arg1: memref<2x8x32xf32, #tpu.memory_space<vmem>>, %arg2: memref<2x8x32xf32, #tpu.memory_space<vmem>>, %arg3: memref<2x1x8xf32, #tpu.memory_space<vmem>>, %arg4: memref<8x128xf32, #tpu.memory_space<vmem>>, %arg5: memref<32x192xf32, #tpu.memory_space<vmem>>, %arg6: memref<64x32xf32, #tpu.memory_space<vmem>>, %arg7: memref<2x8x32xf32, #tpu.memory_space<vmem>>) attributes {dimension_semantics = [#tpu.dimension_semantics<parallel>], iteration_bounds = array<i64: 1>, scalar_prefetch = 0 : i64, scratch_operands = 0 : i64, tpu.core_type = #tpu.core_type<tc>, window_params = [{transform_indices = @transform_0, window_bounds = array<i64: 2, 8, 32>}, {transform_indices = @transform_1, window_bounds = array<i64: 2, 8, 32>}, {transform_indices = @transform_2, window_bounds = array<i64: 2, 1, 8>}, {pipeline_mode = #tpu.pipeline_mode<synchronous>, transform_indices = @transform_3, window_bounds = array<i64: 8, 128>}, {pipeline_mode = #tpu.pipeline_mode<synchronous>, transform_indices = @transform_4, window_bounds = array<i64: 32, 192>}, {pipeline_mode = #tpu.pipeline_mode<synchronous>, transform_indices = @transform_5, window_bounds = array<i64: 64, 32>}, {transform_indices = @transform_6, window_bounds = array<i64: 2, 8, 32>}]} {
    %c0 = arith.constant 0 : index
    %c0_0 = arith.constant 0 : index
    %c0_1 = arith.constant 0 : index
    %0 = vector.load %arg1[%c0, %c0_0, %c0_1] : memref<2x8x32xf32, #tpu.memory_space<vmem>>, vector<2x8x32xf32>
    %c0_2 = arith.constant 0 : index
    %c0_3 = arith.constant 0 : index
    %c0_4 = arith.constant 0 : index
    %1 = vector.load %arg2[%c0_2, %c0_3, %c0_4] : memref<2x8x32xf32, #tpu.memory_space<vmem>>, vector<2x8x32xf32>
    %c0_5 = arith.constant 0 : index
    %c0_6 = arith.constant 0 : index
    %c0_7 = arith.constant 0 : index
    %2 = vector.load %arg3[%c0_5, %c0_6, %c0_7] : memref<2x1x8xf32, #tpu.memory_space<vmem>>, vector<2x1x8xf32>
    %c0_8 = arith.constant 0 : index
    %c0_9 = arith.constant 0 : index
    %3 = vector.load %arg4[%c0_8, %c0_9] : memref<8x128xf32, #tpu.memory_space<vmem>>, vector<8x128xf32>
    %4 = vector.extract_strided_slice %3 {offsets = [0, 0], sizes = [1, 32], strides = [1, 1]} : vector<8x128xf32> to vector<1x32xf32>
    %5 = vector.extract_strided_slice %3 {offsets = [1, 0], sizes = [1, 32], strides = [1, 1]} : vector<8x128xf32> to vector<1x32xf32>
    %6 = vector.extract_strided_slice %3 {offsets = [2, 0], sizes = [1, 32], strides = [1, 1]} : vector<8x128xf32> to vector<1x32xf32>
    %7 = vector.extract_strided_slice %3 {offsets = [3, 0], sizes = [1, 32], strides = [1, 1]} : vector<8x128xf32> to vector<1x32xf32>
    %8 = vector.extract_strided_slice %3 {offsets = [4, 0], sizes = [1, 32], strides = [1, 1]} : vector<8x128xf32> to vector<1x32xf32>
    %9 = vector.extract_strided_slice %3 {offsets = [5, 0], sizes = [1, 64], strides = [1, 1]} : vector<8x128xf32> to vector<1x64xf32>
    %10 = vector.extract_strided_slice %3 {offsets = [6, 0], sizes = [1, 64], strides = [1, 1]} : vector<8x128xf32> to vector<1x64xf32>
    %11 = vector.extract_strided_slice %3 {offsets = [7, 0], sizes = [1, 32], strides = [1, 1]} : vector<8x128xf32> to vector<1x32xf32>
    %12 = vector.extract_strided_slice %3 {offsets = [7, 32], sizes = [1, 32], strides = [1, 1]} : vector<8x128xf32> to vector<1x32xf32>
    %c0_10 = arith.constant 0 : index
    %c0_11 = arith.constant 0 : index
    %13 = vector.load %arg5[%c0_10, %c0_11] : memref<32x192xf32, #tpu.memory_space<vmem>>, vector<32x32xf32>
    %c0_12 = arith.constant 0 : index
    %c32 = arith.constant 32 : index
    %14 = vector.load %arg5[%c0_12, %c32] : memref<32x192xf32, #tpu.memory_space<vmem>>, vector<32x64xf32>
    %c0_13 = arith.constant 0 : index
    %c96 = arith.constant 96 : index
    %15 = vector.load %arg5[%c0_13, %c96] : memref<32x192xf32, #tpu.memory_space<vmem>>, vector<32x32xf32>
    %c0_14 = arith.constant 0 : index
    %c128 = arith.constant 128 : index
    %16 = vector.load %arg5[%c0_14, %c128] : memref<32x192xf32, #tpu.memory_space<vmem>>, vector<32x64xf32>
    %c0_15 = arith.constant 0 : index
    %c0_16 = arith.constant 0 : index
    %17 = vector.load %arg6[%c0_15, %c0_16] : memref<64x32xf32, #tpu.memory_space<vmem>>, vector<64x32xf32>
    %cst = arith.constant dense<0.000000e+00> : vector<2x8xf32>
    %18 = vector.multi_reduction <add>, %0, %cst [2] : vector<2x8x32xf32> to vector<2x8xf32>
    %19 = vector.shape_cast %18 : vector<2x8xf32> to vector<2x8x1xf32>
    %cst_17 = arith.constant 3.200000e+01 : f32
    %20 = vector.broadcast %cst_17 : f32 to vector<2x8x1xf32>
    %21 = arith.divf %19, %20 : vector<2x8x1xf32>
    %22 = vector.broadcast %21 : vector<2x8x1xf32> to vector<2x8x32xf32>
    %23 = arith.subf %0, %22 : vector<2x8x32xf32>
    %24 = arith.mulf %23, %23 : vector<2x8x32xf32>
    %cst_18 = arith.constant dense<0.000000e+00> : vector<2x8xf32>
    %25 = vector.multi_reduction <add>, %24, %cst_18 [2] : vector<2x8x32xf32> to vector<2x8xf32>
    %26 = vector.shape_cast %25 : vector<2x8xf32> to vector<2x8x1xf32>
    %cst_19 = arith.constant 3.200000e+01 : f32
    %27 = vector.broadcast %cst_19 : f32 to vector<2x8x1xf32>
    %28 = arith.divf %26, %27 : vector<2x8x1xf32>
    %29 = vector.broadcast %21 : vector<2x8x1xf32> to vector<2x8x32xf32>
    %30 = arith.subf %0, %29 : vector<2x8x32xf32>
    %cst_20 = arith.constant 9.99999974E-6 : f32
    %31 = vector.broadcast %cst_20 : f32 to vector<2x8x1xf32>
    %32 = arith.addf %28, %31 : vector<2x8x1xf32>
    %33 = math.rsqrt %32 : vector<2x8x1xf32>
    %34 = vector.broadcast %33 : vector<2x8x1xf32> to vector<2x8x32xf32>
    %35 = arith.mulf %30, %34 : vector<2x8x32xf32>
    %36 = vector.shape_cast %4 : vector<1x32xf32> to vector<1x1x32xf32>
    %37 = vector.broadcast %36 : vector<1x1x32xf32> to vector<2x8x32xf32>
    %38 = arith.mulf %35, %37 : vector<2x8x32xf32>
    %39 = vector.shape_cast %5 : vector<1x32xf32> to vector<1x1x32xf32>
    %40 = vector.broadcast %39 : vector<1x1x32xf32> to vector<2x8x32xf32>
    %41 = arith.addf %38, %40 : vector<2x8x32xf32>
    %42 = vector.shape_cast %41 : vector<2x8x32xf32> to vector<16x32xf32>
    %cst_21 = arith.constant dense<0.000000e+00> : vector<16x32xf32>
    %43 = tpu.matmul %42, %13, %cst_21 {dimension_numbers = #tpu.dot_dimension_numbers<[1], [0], [0], [1], [0, 0, 1, 1], [], []>} : vector<16x32xf32>, vector<32x32xf32>, vector<16x32xf32> -> vector<16x32xf32>
    %44 = vector.broadcast %8 : vector<1x32xf32> to vector<16x32xf32>
    %45 = arith.addf %43, %44 : vector<16x32xf32>
    %46 = vector.shape_cast %1 : vector<2x8x32xf32> to vector<16x32xf32>
    %cst_22 = arith.constant dense<0.000000e+00> : vector<16x64xf32>
    %47 = tpu.matmul %46, %14, %cst_22 {dimension_numbers = #tpu.dot_dimension_numbers<[1], [0], [0], [1], [0, 0, 1, 1], [], []>} : vector<16x32xf32>, vector<32x64xf32>, vector<16x64xf32> -> vector<16x64xf32>
    %48 = vector.broadcast %9 : vector<1x64xf32> to vector<16x64xf32>
    %49 = arith.addf %47, %48 : vector<16x64xf32>
    %50 = vector.shape_cast %45 : vector<16x32xf32> to vector<2x8x4x8xf32>
    %51 = tpu.transpose %50, [0, 2, 1, 3] : vector<2x8x4x8xf32> -> vector<2x4x8x8xf32>
    %52 = vector.shape_cast %51 : vector<2x4x8x8xf32> to vector<8x8x8xf32>
    %53 = vector.extract_strided_slice %49 {offsets = [0, 0], sizes = [16, 32], strides = [1, 1]} : vector<16x64xf32> to vector<16x32xf32>
    %54 = vector.shape_cast %53 : vector<16x32xf32> to vector<2x8x4x8xf32>
    %55 = tpu.transpose %54, [0, 2, 1, 3] : vector<2x8x4x8xf32> -> vector<2x4x8x8xf32>
    %56 = vector.shape_cast %55 : vector<2x4x8x8xf32> to vector<8x8x8xf32>
    %57 = vector.extract_strided_slice %49 {offsets = [0, 32], sizes = [16, 32], strides = [1, 1]} : vector<16x64xf32> to vector<16x32xf32>
    %58 = vector.shape_cast %57 : vector<16x32xf32> to vector<2x8x4x8xf32>
    %59 = tpu.transpose %58, [0, 2, 1, 3] : vector<2x8x4x8xf32> -> vector<2x4x8x8xf32>
    %60 = vector.shape_cast %59 : vector<2x4x8x8xf32> to vector<8x8x8xf32>
    "tpu.trace_start"() <{level = 10 : i32, message = "bqd,bkd->bqk"}> : () -> ()
    %cst_23 = arith.constant dense<0.000000e+00> : vector<8x8x8xf32>
    %61 = tpu.matmul %52, %56, %cst_23 {dimension_numbers = #tpu.dot_dimension_numbers<[2], [2], [1], [1], [0, 0, 0, 1, 1, 1], [0], [0]>} : vector<8x8x8xf32>, vector<8x8x8xf32>, vector<8x8x8xf32> -> vector<8x8x8xf32>
    "tpu.trace_stop"() : () -> ()
    %cst_24 = arith.constant 0.353553385 : f32
    %62 = vector.broadcast %cst_24 : f32 to vector<8x8x8xf32>
    %63 = arith.mulf %61, %62 : vector<8x8x8xf32>
    %64 = vector.shape_cast %63 : vector<8x8x8xf32> to vector<2x4x8x8xf32>
    %65 = vector.shape_cast %2 : vector<2x1x8xf32> to vector<2x1x1x8xf32>
    %cst_25 = arith.constant 0.000000e+00 : f32
    %66 = vector.broadcast %cst_25 : f32 to vector<2x1x1x8xf32>
    %67 = arith.cmpf oeq, %65, %66 : vector<2x1x1x8xf32>
    %cst_26 = arith.constant -1.000000e+09 : f32
    %68 = vector.shape_cast %67 : vector<2x1x1x8xi1> to vector<2x1x1x8xi1>
    %69 = vector.broadcast %68 : vector<2x1x1x8xi1> to vector<2x4x8x8xi1>
    %70 = vector.broadcast %cst_26 : f32 to vector<2x4x8x8xf32>
    %71 = arith.select %69, %70, %64 : vector<2x4x8x8xi1>, vector<2x4x8x8xf32>
    %72 = vector.shape_cast %71 : vector<2x4x8x8xf32> to vector<8x8x8xf32>
    %cst_27 = arith.constant dense<0xFF800000> : vector<8x8xf32>
    %73 = vector.multi_reduction <maximumf>, %72, %cst_27 [2] : vector<8x8x8xf32> to vector<8x8xf32>
    %74 = vector.shape_cast %73 : vector<8x8xf32> to vector<8x8x1xf32>
    %75 = vector.broadcast %74 : vector<8x8x1xf32> to vector<8x8x8xf32>
    %76 = arith.subf %72, %75 : vector<8x8x8xf32>
    %77 = math.exp %76 : vector<8x8x8xf32>
    %cst_28 = arith.constant dense<0.000000e+00> : vector<8x8xf32>
    %78 = vector.multi_reduction <add>, %77, %cst_28 [2] : vector<8x8x8xf32> to vector<8x8xf32>
    %79 = vector.shape_cast %78 : vector<8x8xf32> to vector<8x8x1xf32>
    %80 = vector.broadcast %79 : vector<8x8x1xf32> to vector<8x8x8xf32>
    %81 = arith.divf %77, %80 : vector<8x8x8xf32>
    "tpu.trace_start"() <{level = 10 : i32, message = "bqk,bkd->bqd"}> : () -> ()
    %cst_29 = arith.constant dense<0.000000e+00> : vector<8x8x8xf32>
    %82 = tpu.matmul %81, %60, %cst_29 {dimension_numbers = #tpu.dot_dimension_numbers<[2], [1], [1], [2], [0, 0, 0, 1, 1, 2], [0], [0]>} : vector<8x8x8xf32>, vector<8x8x8xf32>, vector<8x8x8xf32> -> vector<8x8x8xf32>
    "tpu.trace_stop"() : () -> ()
    %83 = vector.shape_cast %82 : vector<8x8x8xf32> to vector<2x4x8x8xf32>
    %84 = tpu.transpose %83, [0, 2, 1, 3] : vector<2x4x8x8xf32> -> vector<2x8x4x8xf32>
    %85 = vector.shape_cast %84 : vector<2x8x4x8xf32> to vector<16x32xf32>
    %cst_30 = arith.constant dense<0.000000e+00> : vector<16x32xf32>
    %86 = tpu.matmul %85, %15, %cst_30 {dimension_numbers = #tpu.dot_dimension_numbers<[1], [0], [0], [1], [0, 0, 1, 1], [], []>} : vector<16x32xf32>, vector<32x32xf32>, vector<16x32xf32> -> vector<16x32xf32>
    %87 = vector.broadcast %11 : vector<1x32xf32> to vector<16x32xf32>
    %88 = arith.addf %86, %87 : vector<16x32xf32>
    %89 = vector.shape_cast %88 : vector<16x32xf32> to vector<2x8x32xf32>
    %90 = arith.addf %0, %89 : vector<2x8x32xf32>
    %cst_31 = arith.constant dense<0.000000e+00> : vector<2x8xf32>
    %91 = vector.multi_reduction <add>, %90, %cst_31 [2] : vector<2x8x32xf32> to vector<2x8xf32>
    %92 = vector.shape_cast %91 : vector<2x8xf32> to vector<2x8x1xf32>
    %cst_32 = arith.constant 3.200000e+01 : f32
    %93 = vector.broadcast %cst_32 : f32 to vector<2x8x1xf32>
    %94 = arith.divf %92, %93 : vector<2x8x1xf32>
    %95 = vector.broadcast %94 : vector<2x8x1xf32> to vector<2x8x32xf32>
    %96 = arith.subf %90, %95 : vector<2x8x32xf32>
    %97 = arith.mulf %96, %96 : vector<2x8x32xf32>
    %cst_33 = arith.constant dense<0.000000e+00> : vector<2x8xf32>
    %98 = vector.multi_reduction <add>, %97, %cst_33 [2] : vector<2x8x32xf32> to vector<2x8xf32>
    %99 = vector.shape_cast %98 : vector<2x8xf32> to vector<2x8x1xf32>
    %cst_34 = arith.constant 3.200000e+01 : f32
    %100 = vector.broadcast %cst_34 : f32 to vector<2x8x1xf32>
    %101 = arith.divf %99, %100 : vector<2x8x1xf32>
    %102 = vector.broadcast %94 : vector<2x8x1xf32> to vector<2x8x32xf32>
    %103 = arith.subf %90, %102 : vector<2x8x32xf32>
    %cst_35 = arith.constant 9.99999974E-6 : f32
    %104 = vector.broadcast %cst_35 : f32 to vector<2x8x1xf32>
    %105 = arith.addf %101, %104 : vector<2x8x1xf32>
    %106 = math.rsqrt %105 : vector<2x8x1xf32>
    %107 = vector.broadcast %106 : vector<2x8x1xf32> to vector<2x8x32xf32>
    %108 = arith.mulf %103, %107 : vector<2x8x32xf32>
    %109 = vector.shape_cast %6 : vector<1x32xf32> to vector<1x1x32xf32>
    %110 = vector.broadcast %109 : vector<1x1x32xf32> to vector<2x8x32xf32>
    %111 = arith.mulf %108, %110 : vector<2x8x32xf32>
    %112 = vector.shape_cast %7 : vector<1x32xf32> to vector<1x1x32xf32>
    %113 = vector.broadcast %112 : vector<1x1x32xf32> to vector<2x8x32xf32>
    %114 = arith.addf %111, %113 : vector<2x8x32xf32>
    %115 = vector.shape_cast %114 : vector<2x8x32xf32> to vector<16x32xf32>
    %cst_36 = arith.constant dense<0.000000e+00> : vector<16x64xf32>
    %116 = tpu.matmul %115, %16, %cst_36 {dimension_numbers = #tpu.dot_dimension_numbers<[1], [0], [0], [1], [0, 0, 1, 1], [], []>} : vector<16x32xf32>, vector<32x64xf32>, vector<16x64xf32> -> vector<16x64xf32>
    %117 = vector.broadcast %10 : vector<1x64xf32> to vector<16x64xf32>
    %118 = arith.addf %116, %117 : vector<16x64xf32>
    %cst_37 = arith.constant 0.000000e+00 : f32
    %119 = vector.broadcast %cst_37 : f32 to vector<16x64xf32>
    %120 = arith.maximumf %118, %119 : vector<16x64xf32>
    %cst_38 = arith.constant dense<0.000000e+00> : vector<16x32xf32>
    %121 = tpu.matmul %120, %17, %cst_38 {dimension_numbers = #tpu.dot_dimension_numbers<[1], [0], [0], [1], [0, 0, 1, 1], [], []>} : vector<16x64xf32>, vector<64x32xf32>, vector<16x32xf32> -> vector<16x32xf32>
    %122 = vector.broadcast %12 : vector<1x32xf32> to vector<16x32xf32>
    %123 = arith.addf %121, %122 : vector<16x32xf32>
    %124 = vector.shape_cast %123 : vector<16x32xf32> to vector<2x8x32xf32>
    %125 = arith.addf %90, %124 : vector<2x8x32xf32>
    %c0_39 = arith.constant 0 : index
    %c0_40 = arith.constant 0 : index
    %c0_41 = arith.constant 0 : index
    %126 = vector.load %arg7[%c0_39, %c0_40, %c0_41] : memref<2x8x32xf32, #tpu.memory_space<vmem>>, vector<2x8x32xf32>
    tpu.vector_store %arg7[%c0_39, %c0_40, %c0_41], %125 {strides = array<i32>} : memref<2x8x32xf32, #tpu.memory_space<vmem>>, vector<2x8x32xf32>,
    return
  }
  func.func @transform_0(%arg0: i32) -> (i32, i32, i32) {
    %c0_i32 = arith.constant 0 : i32
    %c0_i32_0 = arith.constant 0 : i32
    %c0_i32_1 = arith.constant 0 : i32
    return %arg0, %c0_i32, %c0_i32_0 : i32, i32, i32
  }
  func.func @transform_1(%arg0: i32) -> (i32, i32, i32) {
    %c0_i32 = arith.constant 0 : i32
    %c0_i32_0 = arith.constant 0 : i32
    %c0_i32_1 = arith.constant 0 : i32
    return %arg0, %c0_i32, %c0_i32_0 : i32, i32, i32
  }
  func.func @transform_2(%arg0: i32) -> (i32, i32, i32) {
    %c0_i32 = arith.constant 0 : i32
    %c0_i32_0 = arith.constant 0 : i32
    %c0_i32_1 = arith.constant 0 : i32
    return %arg0, %c0_i32, %c0_i32_0 : i32, i32, i32
  }
  func.func @transform_3(%arg0: i32) -> (i32, i32) {
    %c0_i32 = arith.constant 0 : i32
    %c0_i32_0 = arith.constant 0 : i32
    %c0_i32_1 = arith.constant 0 : i32
    return %c0_i32, %c0_i32_0 : i32, i32
  }
  func.func @transform_4(%arg0: i32) -> (i32, i32) {
    %c0_i32 = arith.constant 0 : i32
    %c0_i32_0 = arith.constant 0 : i32
    %c0_i32_1 = arith.constant 0 : i32
    return %c0_i32, %c0_i32_0 : i32, i32
  }
  func.func @transform_5(%arg0: i32) -> (i32, i32) {
    %c0_i32 = arith.constant 0 : i32
    %c0_i32_0 = arith.constant 0 : i32
    %c0_i32_1 = arith.constant 0 : i32
    return %c0_i32, %c0_i32_0 : i32, i32
  }
  func.func @transform_6(%arg0: i32) -> (i32, i32, i32) {
    %c0_i32 = arith.constant 0 : i32
    %c0_i32_0 = arith.constant 0 : i32
    %c0_i32_1 = arith.constant 0 : i32
    return %arg0, %c0_i32, %c0_i32_0 : i32, i32, i32
  }
}

</mosaic_0001>

<llo_original>
// kernel: tpu_custom_call.1
$region0: #{tpu_custom_call.1}
  #allocation0 [shape = 'u32[]', space=smem, size = 0x4, offset = 0x4, fixed_abs, tag = 'smem constant byte address 0x4 - core index']
  #allocation1 [shape = 'u32[144,128]{1,0:T(1,128)}', space=vmem, size = 0x12000, scoped, tag = 'internal scratch']
  %s0 = inlined_call_operand.vmem [shape: f32[2,8,32], index: 0, kind: input, shape index: {}]
  %s1 = inlined_call_operand.vmem [shape: f32[2,8,32], index: 1, kind: input, shape index: {}]
  %s2 = inlined_call_operand.vmem [shape: f32[2,1,8], index: 2, kind: input, shape index: {}]
  %s3 = inlined_call_operand.vmem [shape: f32[8,128], index: 3, kind: input, shape index: {}]
  %s4 = inlined_call_operand.vmem [shape: f32[32,192], index: 4, kind: input, shape index: {}]
  %s5 = inlined_call_operand.vmem [shape: f32[64,32], index: 5, kind: input, shape index: {}]
  %s6 = inlined_call_operand.hbm [shape: f32[2,8,32], index: 6, kind: output, shape index: {}]
  %s7 = sld [smem:[#allocation0]]
  $region34: #{tpu_custom_call.1} parent=0
    _
  %s9 = ssub.s32 1, %s7
  %s10 = scalar_select 0, %s9, %s7
  $region1: #{tpu_custom_call.1} parent=0
    #allocation2 [shape = 'u8[8192]{0}', space=vmem, size = 0x2000, scoped, tag = 'output window, operand 0, single buffered']
    #allocation3 [shape = 's32[1]{0}', space=sflag, size = 0x4, scoped, tag = 'scoped memory for tpu_custom_call.1']
    %11 = vsyncpa [#allocation3], 0
    // Predicated region
    $region2: #{tpu_custom_call.1} parent=1 // pred_check
      _
    $region3: #{tpu_custom_call.1} parent=1 // pred_check_branch
      %13 = sbr.rel (0) target = $region5
    $region4: #{tpu_custom_call.1} parent=1 // pred_region
      _
    $region5: #{tpu_custom_call.1} parent=1 // pred_fallthru
      _
    // Predicated region
    $region6: #{tpu_custom_call.1} parent=1 // pred_check
      _
    $region7: #{tpu_custom_call.1} parent=1 // pred_check_branch
      %15 = sbr.rel (0) target = $region9
    $region8: #{tpu_custom_call.1} parent=1 // pred_region
      _
    $region9: #{tpu_custom_call.1} parent=1 // pred_fallthru
      _
    // Predicated region
    $region10: #{tpu_custom_call.1} parent=1 // pred_check
      _
    $region11: #{tpu_custom_call.1} parent=1 // pred_check_branch
      %17 = sbr.rel (0) target = $region13
    $region12: #{tpu_custom_call.1} parent=1 // pred_region
      _
    $region13: #{tpu_custom_call.1} parent=1 // pred_fallthru
      _
    // Predicated region
    $region14: #{tpu_custom_call.1} parent=1 // pred_check
      _
    $region15: #{tpu_custom_call.1} parent=1 // pred_check_branch
      %19 = sbr.rel (0) target = $region17
    $region16: #{tpu_custom_call.1} parent=1 // pred_region
      _
    $region17: #{tpu_custom_call.1} parent=1 // pred_fallthru
      _
    // Predicated region
    $region18: #{tpu_custom_call.1} parent=1 // pred_check
      _
    $region19: #{tpu_custom_call.1} parent=1 // pred_check_branch
      %21 = sbr.rel (0) target = $region21
    $region20: #{tpu_custom_call.1} parent=1 // pred_region
      _
    $region21: #{tpu_custom_call.1} parent=1 // pred_fallthru
      _
    // Predicated region
    $region22: #{tpu_custom_call.1} parent=1 // pred_check
      _
    $region23: #{tpu_custom_call.1} parent=1 // pred_check_branch
      %23 = sbr.rel (0) target = $region25
    $region24: #{tpu_custom_call.1} parent=1 // pred_region
      _
    $region25: #{tpu_custom_call.1} parent=1 // pred_fallthru
      _
    %v24 = vld [vmem:[%s0] sm:$0xff]
    %v25 = vld [vmem:[%s0 + $0x8] sm:$0xff]
    %v26 = vld [vmem:[%s1] sm:$0xff]
    %v27 = vld [vmem:[%s1 + $0x8] sm:$0xff]
    %v28 = vld [vmem:[%s2] sm:$0x1]
    %v29 = vld [vmem:[%s2 + $0x1] sm:$0x1]
    %v30 = vld [vmem:[%s3] sm:$0xff]
    %v31 = vld [vmem:[%s4] sm:$0xff]
    %v32 = vld [vmem:[%s4 + $0x10] sm:$0xff]
    %v33 = vld [vmem:[%s4 + $0x20] sm:$0xff]
    %v34 = vld [vmem:[%s4 + $0x30] sm:$0xff]
    %v35 = vld [vmem:[%s4 + $0x8] sm:$0xff]
    %v36 = vld [vmem:[%s4 + $0x18] sm:$0xff]
    %v37 = vld [vmem:[%s4 + $0x28] sm:$0xff]
    %v38 = vld [vmem:[%s4 + $0x38] sm:$0xff]
    %v39 = vld [vmem:[%s5] sm:$0xff]
    %v40 = vld [vmem:[%s5 + $0x8] sm:$0xff]
    %v41 = vld [vmem:[%s5 + $0x10] sm:$0xff]
    %v42 = vld [vmem:[%s5 + $0x18] sm:$0xff]
    %v43 = vld [vmem:[%s5 + $0x20] sm:$0xff]
    %v44 = vld [vmem:[%s5 + $0x28] sm:$0xff]
    %v45 = vld [vmem:[%s5 + $0x30] sm:$0xff]
    %v46 = vld [vmem:[%s5 + $0x38] sm:$0xff]
    %vm47 = vcmask 261120
    %v48 = vsel %vm47, %v24, 0.0
    %49 = vadd.xlane.f32.xlu0 %v48
    %v50 = vpop.xlane.xlu0 %49
    %v51 = vsel %vm47, %v25, 0.0
    %52 = vadd.xlane.f32.xlu0 %v51
    %v53 = vpop.xlane.xlu0 %52
    %v54 = vrcp.pop 32.0
    %v55 = vmul.f32 %v50, %v54
    %v56 = vmul.f32 %v53, %v54
    %v57 = vsub.f32 %v24, %v55
    %v58 = vsub.f32 %v25, %v56
    %v59 = vmul.f32 %v57, %v57
    %v60 = vmul.f32 %v58, %v58
    %v61 = vsel %vm47, %v59, 0.0
    %62 = vadd.xlane.f32.xlu0 %v61
    %v63 = vpop.xlane.xlu0 %62
    %v64 = vsel %vm47, %v60, 0.0
    %65 = vadd.xlane.f32.xlu0 %v64
    %v66 = vpop.xlane.xlu0 %65
    %v67 = vmul.f32 %v63, %v54
    %v68 = vmul.f32 %v66, %v54
    %v69 = vadd.f32 %v67, 1e-05
    %v70 = vadd.f32 %v68, 1e-05
    %v71 = vrsqrt.pop %v69
    %v72 = vrsqrt.pop %v70
    %v73 = vmul.f32 %v57, %v71
    %v74 = vmul.f32 %v58, %v72
    %v75 = vlaneseq
    %v76 = vshrl.u32 %v75, 7
    %v77 = vsub.s32 0, %v76
    %v78 = vrot.slane %v30, %v77
    %v79 = vmul.f32 %v73, %v78
    %v80 = vmul.f32 %v74, %v78
    %v81 = vlaneseq
    %v82 = vshrl.u32 %v81, 7
    %v83 = vsub.s32 1, %v82
    %v84 = vrot.slane %v30, %v83
    %v85 = vadd.f32 %v79, %v84
    %v86 = vadd.f32 %v80, %v84
    %v87 = vlaneseq
    %v88 = vshrl.u32 %v87, 7
    %v89 = vsub.s32 4, %v88
    %v90 = vrot.slane %v30, %v89
    %v92 = vsel %vm47, %v85, 0
    %v95 = vsel %vm47, %v86, 0
    %97 = vmatprep.subr.mxu0 0.0
    %98 = vmatpush1.msra.mxu0 %v31
    %99 = vmatprep.subr.mxu0 0.0
    %100 = vmatpush1.msra.mxu0 %v32
    %101 = vmatprep.subr.mxu0 0.0
    %102 = vmatpush1.msra.mxu0 %v33
    %103 = vmatprep.subr.mxu0 0.0
    %104 = vmatpush1.msra.mxu0 %v34
    %105 = vmatprep.subr.mxu0 0.0
    %106 = vmatpush1.msra.mxu0 0.0
    %107 = vmatprep.subr.mxu0 0.0
    %108 = vmatpush1.msra.mxu0 0.0
    %109 = vmatprep.subr.mxu0 0.0
    %110 = vmatpush1.msra.mxu0 0.0
    %111 = vmatprep.subr.mxu0 0.0
    %112 = vmatpush1.msra.mxu0 0.0
    %113 = vmatprep.subr.mxu0 0.0
    %114 = vmatpush1.msra.mxu0 0.0
    %115 = vmatprep.subr.mxu0 0.0
    %116 = vmatpush1.msra.mxu0 0.0
    %117 = vmatprep.subr.mxu0 0.0
    %118 = vmatpush1.msra.mxu0 0.0
    %119 = vmatprep.subr.mxu0 0.0
    %120 = vmatpush1.msra.mxu0 0.0
    %121 = vmatprep.subr.mxu0 0.0
    %122 = vmatpush1.msra.mxu0 0.0
    %123 = vmatprep.subr.mxu0 0.0
    %124 = vmatpush1.msra.mxu0 0.0
    %125 = vmatprep.subr.mxu0 0.0
    %126 = vmatpush1.msra.mxu0 0.0
    %127 = vmatprep.subr.mxu0 0.0
    %128 = vmatpush1.msra.mxu0 0.0
    %129 = vmatprep.subr.mxu0 0.0
    %130 = vmatpush1.msra.mxu0 0.0
    %131 = vmatprep.subr.mxu0 0.0
    %132 = vmatpush1.msra.mxu0 0.0
    %133 = vmatprep.subr.mxu0 0.0
    %134 = vmatpush1.msra.mxu0 0.0
    %135 = vmatprep.subr.mxu0 0.0
    %136 = vmatpush1.msra.mxu0 0.0
    %137 = vmatprep.subr.mxu0 0.0
    %138 = vmatpush1.msra.mxu0 0.0
    %139 = vmatprep.subr.mxu0 0.0
    %140 = vmatpush1.msra.mxu0 0.0
    %141 = vmatprep.subr.mxu0 0.0
    %142 = vmatpush1.msra.mxu0 0.0
    %143 = vmatprep.subr.mxu0 0.0
    %144 = vmatpush1.msra.mxu0 0.0
    %145 = vmatprep.subr.mxu0 0.0
    %146 = vmatpush1.msra.mxu0 0.0
    %147 = vmatprep.subr.mxu0 0.0
    %148 = vmatpush1.msra.mxu0 0.0
    %149 = vmatprep.subr.mxu0 0.0
    %150 = vmatpush1.msra.mxu0 0.0
    %151 = vmatprep.subr.mxu0 0.0
    %152 = vmatpush1.msra.mxu0 0.0
    %153 = vmatprep.subr.mxu0 0.0
    %154 = vmatpush1.msra.mxu0 0.0
    %155 = vmatprep.subr.mxu0 0.0
    %156 = vmatpush1.msra.mxu0 0.0
    %157 = vmatprep.subr.mxu0 0.0
    %158 = vmatpush1.msra.mxu0 0.0
    %159 = vmatprep.subr.mxu0 0.0
    %160 = vmatpush1.msra.mxu0 0.0
    %161 = vmatprep.mubr.f32.mxu0 0.0
    %162 = vmatmul.mubr.f32.gmra.mrb[0].mxu0 %v92
    %v163 = vpop.f32.mrb[0].mxu0
    %v164 = vadd.f32 %v90, %v163
    %v165 = vpop.f32.mrb[0].mxu0
    %166 = vmatprep.mubr.f32.mxu0 0.0
    %167 = vmatmul.mubr.f32.gmra.mrb[0].mxu0 %v95
    %v168 = vpop.f32.mrb[0].mxu0
    %v169 = vadd.f32 %v90, %v168
    %v170 = vpop.f32.mrb[0].mxu0
    %171 = vdwg.mxu0
    %v172 = vlaneseq
    %v173 = vshrl.u32 %v172, 7
    %v174 = vsub.s32 5, %v173
    %v175 = vrot.slane %v30, %v174
    %180 = vrot.lane.b32.xlu0 %v31, 96
    %v181 = vpop.permute.xlu0 %180
    %182 = vrot.lane.b32.xlu0 %v32, 96
    %v183 = vpop.permute.xlu0 %182
    %184 = vrot.lane.b32.xlu0 %v33, 96
    %v185 = vpop.permute.xlu0 %184
    %186 = vrot.lane.b32.xlu0 %v34, 96
    %v187 = vpop.permute.xlu0 %186
    %v193 = vsel %vm47, %v26, 0
    %v196 = vsel %vm47, %v27, 0
    %198 = vmatprep.subr.mxu0 0.0
    %199 = vmatpush1.msra.mxu0 %v181
    %200 = vmatprep.subr.mxu0 0.0
    %201 = vmatpush1.msra.mxu0 %v183
    %202 = vmatprep.subr.mxu0 0.0
    %203 = vmatpush1.msra.mxu0 %v185
    %204 = vmatprep.subr.mxu0 0.0
    %205 = vmatpush1.msra.mxu0 %v187
    %206 = vmatprep.subr.mxu0 0.0
    %207 = vmatpush1.msra.mxu0 0.0
    %208 = vmatprep.subr.mxu0 0.0
    %209 = vmatpush1.msra.mxu0 0.0
    %210 = vmatprep.subr.mxu0 0.0
    %211 = vmatpush1.msra.mxu0 0.0
    %212 = vmatprep.subr.mxu0 0.0
    %213 = vmatpush1.msra.mxu0 0.0
    %214 = vmatprep.subr.mxu0 0.0
    %215 = vmatpush1.msra.mxu0 0.0
    %216 = vmatprep.subr.mxu0 0.0
    %217 = vmatpush1.msra.mxu0 0.0
    %218 = vmatprep.subr.mxu0 0.0
    %219 = vmatpush1.msra.mxu0 0.0
    %220 = vmatprep.subr.mxu0 0.0
    %221 = vmatpush1.msra.mxu0 0.0
    %222 = vmatprep.subr.mxu0 0.0
    %223 = vmatpush1.msra.mxu0 0.0
    %224 = vmatprep.subr.mxu0 0.0
    %225 = vmatpush1.msra.mxu0 0.0
    %226 = vmatprep.subr.mxu0 0.0
    %227 = vmatpush1.msra.mxu0 0.0
    %228 = vmatprep.subr.mxu0 0.0
    %229 = vmatpush1.msra.mxu0 0.0
    %230 = vmatprep.subr.mxu0 0.0
    %231 = vmatpush1.msra.mxu0 0.0
    %232 = vmatprep.subr.mxu0 0.0
    %233 = vmatpush1.msra.mxu0 0.0
    %234 = vmatprep.subr.mxu0 0.0
    %235 = vmatpush1.msra.mxu0 0.0
    %236 = vmatprep.subr.mxu0 0.0
    %237 = vmatpush1.msra.mxu0 0.0
    %238 = vmatprep.subr.mxu0 0.0
    %239 = vmatpush1.msra.mxu0 0.0
    %240 = vmatprep.subr.mxu0 0.0
    %241 = vmatpush1.msra.mxu0 0.0
    %242 = vmatprep.subr.mxu0 0.0
    %243 = vmatpush1.msra.mxu0 0.0
    %244 = vmatprep.subr.mxu0 0.0
    %245 = vmatpush1.msra.mxu0 0.0
    %246 = vmatprep.subr.mxu0 0.0
    %247 = vmatpush1.msra.mxu0 0.0
    %248 = vmatprep.subr.mxu0 0.0
    %249 = vmatpush1.msra.mxu0 0.0
    %250 = vmatprep.subr.mxu0 0.0
    %251 = vmatpush1.msra.mxu0 0.0
    %252 = vmatprep.subr.mxu0 0.0
    %253 = vmatpush1.msra.mxu0 0.0
    %254 = vmatprep.subr.mxu0 0.0
    %255 = vmatpush1.msra.mxu0 0.0
    %256 = vmatprep.subr.mxu0 0.0
    %257 = vmatpush1.msra.mxu0 0.0
    %258 = vmatprep.subr.mxu0 0.0
    %259 = vmatpush1.msra.mxu0 0.0
    %260 = vmatprep.subr.mxu0 0.0
    %261 = vmatpush1.msra.mxu0 0.0
    %262 = vmatprep.mubr.f32.mxu0 0.0
    %263 = vmatmul.mubr.f32.gmra.mrb[0].mxu0 %v193
    %v264 = vpop.f32.mrb[0].mxu0
    %v265 = vadd.f32 %v175, %v264
    %v266 = vpop.f32.mrb[0].mxu0
    %267 = vmatprep.mubr.f32.mxu0 0.0
    %268 = vmatmul.mubr.f32.gmra.mrb[0].mxu0 %v196
    %v269 = vpop.f32.mrb[0].mxu0
    %v270 = vadd.f32 %v175, %v269
    %v271 = vpop.f32.mrb[0].mxu0
    %272 = vdwg.mxu0
    %275 = vrot.lane.b32.xlu0 %v164, 120
    %v276 = vpop.permute.xlu0 %275
    %277 = vrot.lane.b32.xlu0 %v169, 120
    %v278 = vpop.permute.xlu0 %277
    %281 = vrot.lane.b32.xlu0 %v164, 112
    %v282 = vpop.permute.xlu0 %281
    %283 = vrot.lane.b32.xlu0 %v169, 112
    %v284 = vpop.permute.xlu0 %283
    %287 = vrot.lane.b32.xlu0 %v164, 104
    %v288 = vpop.permute.xlu0 %287
    %289 = vrot.lane.b32.xlu0 %v169, 104
    %v290 = vpop.permute.xlu0 %289
    %v293 = vcombine.low %v164, %v282
    %v294 = vcombine.high %v164, %v282
    %v296 = vunpack.c.l.s4 1983009808
    %v297 = vunpack.c.0.s8 %v296
    %v298 = vlaneseq
    %v299 = vshrl.u32 %v298, 7
    %v300 = vsub.s32 %v297, %v299
    %v301 = vrot.slane %v293, %v300
    %v303 = vunpack.c.l.s4 1983009808
    %v304 = vunpack.c.0.s8 %v303
    %v305 = vlaneseq
    %v306 = vshrl.u32 %v305, 7
    %v307 = vsub.s32 %v304, %v306
    %v308 = vrot.slane %v294, %v307
    %v309 = vcombine.low %v276, %v288
    %v310 = vcombine.high %v276, %v288
    %v312 = vunpack.c.l.s4 1983009808
    %v313 = vunpack.c.0.s8 %v312
    %v314 = vlaneseq
    %v315 = vshrl.u32 %v314, 7
    %v316 = vsub.s32 %v313, %v315
    %v317 = vrot.slane %v309, %v316
    %v319 = vunpack.c.l.s4 1983009808
    %v320 = vunpack.c.0.s8 %v319
    %v321 = vlaneseq
    %v322 = vshrl.u32 %v321, 7
    %v323 = vsub.s32 %v320, %v322
    %v324 = vrot.slane %v310, %v323
    %v325 = vcombine.low %v301, %v317
    %v326 = vcombine.high %v301, %v317
    %v328 = vunpack.c.l.s4 1934713408
    %v329 = vunpack.c.0.s8 %v328
    %v330 = vlaneseq
    %v331 = vshrl.u32 %v330, 7
    %v332 = vsub.s32 %v329, %v331
    %v333 = vrot.slane %v325, %v332
    %v335 = vunpack.c.l.s4 1934713408
    %v336 = vunpack.c.0.s8 %v335
    %v337 = vlaneseq
    %v338 = vshrl.u32 %v337, 7
    %v339 = vsub.s32 %v336, %v338
    %v340 = vrot.slane %v326, %v339
    %v341 = vcombine.low %v308, %v324
    %v342 = vcombine.high %v308, %v324
    %v344 = vunpack.c.l.s4 1934713408
    %v345 = vunpack.c.0.s8 %v344
    %v346 = vlaneseq
    %v347 = vshrl.u32 %v346, 7
    %v348 = vsub.s32 %v345, %v347
    %v349 = vrot.slane %v341, %v348
    %v351 = vunpack.c.l.s4 1934713408
    %v352 = vunpack.c.0.s8 %v351
    %v353 = vlaneseq
    %v354 = vshrl.u32 %v353, 7
    %v355 = vsub.s32 %v352, %v354
    %v356 = vrot.slane %v342, %v355
    %v357 = vcombine.high %v333, 0.0
    %v358 = vcombine.high %v340, 0.0
    %v359 = vcombine.high %v349, 0.0
    %v360 = vcombine.high %v356, 0.0
    %v361 = vcombine.low %v169, %v284
    %v362 = vcombine.high %v169, %v284
    %v364 = vunpack.c.l.s4 1983009808
    %v365 = vunpack.c.0.s8 %v364
    %v366 = vlaneseq
    %v367 = vshrl.u32 %v366, 7
    %v368 = vsub.s32 %v365, %v367
    %v369 = vrot.slane %v361, %v368
    %v371 = vunpack.c.l.s4 1983009808
    %v372 = vunpack.c.0.s8 %v371
    %v373 = vlaneseq
    %v374 = vshrl.u32 %v373, 7
    %v375 = vsub.s32 %v372, %v374
    %v376 = vrot.slane %v362, %v375
    %v377 = vcombine.low %v278, %v290
    %v378 = vcombine.high %v278, %v290
    %v380 = vunpack.c.l.s4 1983009808
    %v381 = vunpack.c.0.s8 %v380
    %v382 = vlaneseq
    %v383 = vshrl.u32 %v382, 7
    %v384 = vsub.s32 %v381, %v383
    %v385 = vrot.slane %v377, %v384
    %v387 = vunpack.c.l.s4 1983009808
    %v388 = vunpack.c.0.s8 %v387
    %v389 = vlaneseq
    %v390 = vshrl.u32 %v389, 7
    %v391 = vsub.s32 %v388, %v390
    %v392 = vrot.slane %v378, %v391
    %v393 = vcombine.low %v369, %v385
    %v394 = vcombine.high %v369, %v385
    %v396 = vunpack.c.l.s4 1934713408
    %v397 = vunpack.c.0.s8 %v396
    %v398 = vlaneseq
    %v399 = vshrl.u32 %v398, 7
    %v400 = vsub.s32 %v397, %v399
    %v401 = vrot.slane %v393, %v400
    %v403 = vunpack.c.l.s4 1934713408
    %v404 = vunpack.c.0.s8 %v403
    %v405 = vlaneseq
    %v406 = vshrl.u32 %v405, 7
    %v407 = vsub.s32 %v404, %v406
    %v408 = vrot.slane %v394, %v407
    %v409 = vcombine.low %v376, %v392
    %v410 = vcombine.high %v376, %v392
    %v412 = vunpack.c.l.s4 1934713408
    %v413 = vunpack.c.0.s8 %v412
    %v414 = vlaneseq
    %v415 = vshrl.u32 %v414, 7
    %v416 = vsub.s32 %v413, %v415
    %v417 = vrot.slane %v409, %v416
    %v419 = vunpack.c.l.s4 1934713408
    %v420 = vunpack.c.0.s8 %v419
    %v421 = vlaneseq
    %v422 = vshrl.u32 %v421, 7
    %v423 = vsub.s32 %v420, %v422
    %v424 = vrot.slane %v410, %v423
    %v425 = vcombine.high %v401, 0.0
    %v426 = vcombine.high %v408, 0.0
    %v427 = vcombine.high %v417, 0.0
    %v428 = vcombine.high %v424, 0.0
    %v429 = vcombine.low %v333, %v340
    %v431 = vunpack.c.l.s4 1983009808
    %v432 = vunpack.c.0.s8 %v431
    %v433 = vlaneseq
    %v434 = vshrl.u32 %v433, 7
    %v435 = vsub.s32 %v432, %v434
    %v436 = vrot.slane %v429, %v435
    %v437 = vcombine.low %v357, %v358
    %v439 = vunpack.c.l.s4 1983009808
    %v440 = vunpack.c.0.s8 %v439
    %v441 = vlaneseq
    %v442 = vshrl.u32 %v441, 7
    %v443 = vsub.s32 %v440, %v442
    %v444 = vrot.slane %v437, %v443
    %v445 = vcombine.low %v349, %v356
    %v447 = vunpack.c.l.s4 1983009808
    %v448 = vunpack.c.0.s8 %v447
    %v449 = vlaneseq
    %v450 = vshrl.u32 %v449, 7
    %v451 = vsub.s32 %v448, %v450
    %v452 = vrot.slane %v445, %v451
    %v453 = vcombine.low %v359, %v360
    %v455 = vunpack.c.l.s4 1983009808
    %v456 = vunpack.c.0.s8 %v455
    %v457 = vlaneseq
    %v458 = vshrl.u32 %v457, 7
    %v459 = vsub.s32 %v456, %v458
    %v460 = vrot.slane %v453, %v459
    %v461 = vcombine.low %v436, %v444
    %v462 = vcombine.high %v436, %v444
    %v464 = vunpack.c.l.s4 1934713408
    %v465 = vunpack.c.0.s8 %v464
    %v466 = vlaneseq
    %v467 = vshrl.u32 %v466, 7
    %v468 = vsub.s32 %v465, %v467
    %v469 = vrot.slane %v461, %v468
    %v471 = vunpack.c.l.s4 1934713408
    %v472 = vunpack.c.0.s8 %v471
    %v473 = vlaneseq
    %v474 = vshrl.u32 %v473, 7
    %v475 = vsub.s32 %v472, %v474
    %v476 = vrot.slane %v462, %v475
    %v477 = vcombine.low %v452, %v460
    %v478 = vcombine.high %v452, %v460
    %v480 = vunpack.c.l.s4 1934713408
    %v481 = vunpack.c.0.s8 %v480
    %v482 = vlaneseq
    %v483 = vshrl.u32 %v482, 7
    %v484 = vsub.s32 %v481, %v483
    %v485 = vrot.slane %v477, %v484
    %v487 = vunpack.c.l.s4 1934713408
    %v488 = vunpack.c.0.s8 %v487
    %v489 = vlaneseq
    %v490 = vshrl.u32 %v489, 7
    %v491 = vsub.s32 %v488, %v490
    %v492 = vrot.slane %v478, %v491
    %v493 = vcombine.low %v469, %v485
    %v494 = vcombine.high %v469, %v485
    %v495 = vcombine.low %v476, %v492
    %v496 = vcombine.high %v476, %v492
    %v497 = vcombine.low %v401, %v408
    %v499 = vunpack.c.l.s4 1983009808
    %v500 = vunpack.c.0.s8 %v499
    %v501 = vlaneseq
    %v502 = vshrl.u32 %v501, 7
    %v503 = vsub.s32 %v500, %v502
    %v504 = vrot.slane %v497, %v503
    %v505 = vcombine.low %v425, %v426
    %v507 = vunpack.c.l.s4 1983009808
    %v508 = vunpack.c.0.s8 %v507
    %v509 = vlaneseq
    %v510 = vshrl.u32 %v509, 7
    %v511 = vsub.s32 %v508, %v510
    %v512 = vrot.slane %v505, %v511
    %v513 = vcombine.low %v417, %v424
    %v515 = vunpack.c.l.s4 1983009808
    %v516 = vunpack.c.0.s8 %v515
    %v517 = vlaneseq
    %v518 = vshrl.u32 %v517, 7
    %v519 = vsub.s32 %v516, %v518
    %v520 = vrot.slane %v513, %v519
    %v521 = vcombine.low %v427, %v428
    %v523 = vunpack.c.l.s4 1983009808
    %v524 = vunpack.c.0.s8 %v523
    %v525 = vlaneseq
    %v526 = vshrl.u32 %v525, 7
    %v527 = vsub.s32 %v524, %v526
    %v528 = vrot.slane %v521, %v527
    %v529 = vcombine.low %v504, %v512
    %v530 = vcombine.high %v504, %v512
    %v532 = vunpack.c.l.s4 1934713408
    %v533 = vunpack.c.0.s8 %v532
    %v534 = vlaneseq
    %v535 = vshrl.u32 %v534, 7
    %v536 = vsub.s32 %v533, %v535
    %v537 = vrot.slane %v529, %v536
    %v539 = vunpack.c.l.s4 1934713408
    %v540 = vunpack.c.0.s8 %v539
    %v541 = vlaneseq
    %v542 = vshrl.u32 %v541, 7
    %v543 = vsub.s32 %v540, %v542
    %v544 = vrot.slane %v530, %v543
    %v545 = vcombine.low %v520, %v528
    %v546 = vcombine.high %v520, %v528
    %v548 = vunpack.c.l.s4 1934713408
    %v549 = vunpack.c.0.s8 %v548
    %v550 = vlaneseq
    %v551 = vshrl.u32 %v550, 7
    %v552 = vsub.s32 %v549, %v551
    %v553 = vrot.slane %v545, %v552
    %v555 = vunpack.c.l.s4 1934713408
    %v556 = vunpack.c.0.s8 %v555
    %v557 = vlaneseq
    %v558 = vshrl.u32 %v557, 7
    %v559 = vsub.s32 %v556, %v558
    %v560 = vrot.slane %v546, %v559
    %v561 = vcombine.low %v537, %v553
    %v562 = vcombine.high %v537, %v553
    %v563 = vcombine.low %v544, %v560
    %v564 = vcombine.high %v544, %v560
    %567 = vrot.lane.b32.xlu0 %v265, 120
    %v568 = vpop.permute.xlu0 %567
    %569 = vrot.lane.b32.xlu0 %v270, 120
    %v570 = vpop.permute.xlu0 %569
    %573 = vrot.lane.b32.xlu0 %v265, 112
    %v574 = vpop.permute.xlu0 %573
    %575 = vrot.lane.b32.xlu0 %v270, 112
    %v576 = vpop.permute.xlu0 %575
    %579 = vrot.lane.b32.xlu0 %v265, 104
    %v580 = vpop.permute.xlu0 %579
    %581 = vrot.lane.b32.xlu0 %v270, 104
    %v582 = vpop.permute.xlu0 %581
    %v585 = vcombine.low %v265, %v574
    %v586 = vcombine.high %v265, %v574
    %v588 = vunpack.c.l.s4 1983009808
    %v589 = vunpack.c.0.s8 %v588
    %v590 = vlaneseq
    %v591 = vshrl.u32 %v590, 7
    %v592 = vsub.s32 %v589, %v591
    %v593 = vrot.slane %v585, %v592
    %v595 = vunpack.c.l.s4 1983009808
    %v596 = vunpack.c.0.s8 %v595
    %v597 = vlaneseq
    %v598 = vshrl.u32 %v597, 7
    %v599 = vsub.s32 %v596, %v598
    %v600 = vrot.slane %v586, %v599
    %v601 = vcombine.low %v568, %v580
    %v602 = vcombine.high %v568, %v580
    %v604 = vunpack.c.l.s4 1983009808
    %v605 = vunpack.c.0.s8 %v604
    %v606 = vlaneseq
    %v607 = vshrl.u32 %v606, 7
    %v608 = vsub.s32 %v605, %v607
    %v609 = vrot.slane %v601, %v608
    %v611 = vunpack.c.l.s4 1983009808
    %v612 = vunpack.c.0.s8 %v611
    %v613 = vlaneseq
    %v614 = vshrl.u32 %v613, 7
    %v615 = vsub.s32 %v612, %v614
    %v616 = vrot.slane %v602, %v615
    %v617 = vcombine.low %v593, %v609
    %v618 = vcombine.high %v593, %v609
    %v620 = vunpack.c.l.s4 1934713408
    %v621 = vunpack.c.0.s8 %v620
    %v622 = vlaneseq
    %v623 = vshrl.u32 %v622, 7
    %v624 = vsub.s32 %v621, %v623
    %v625 = vrot.slane %v617, %v624
    %v627 = vunpack.c.l.s4 1934713408
    %v628 = vunpack.c.0.s8 %v627
    %v629 = vlaneseq
    %v630 = vshrl.u32 %v629, 7
    %v631 = vsub.s32 %v628, %v630
    %v632 = vrot.slane %v618, %v631
    %v633 = vcombine.low %v600, %v616
    %v634 = vcombine.high %v600, %v616
    %v636 = vunpack.c.l.s4 1934713408
    %v637 = vunpack.c.0.s8 %v636
    %v638 = vlaneseq
    %v639 = vshrl.u32 %v638, 7
    %v640 = vsub.s32 %v637, %v639
    %v641 = vrot.slane %v633, %v640
    %v643 = vunpack.c.l.s4 1934713408
    %v644 = vunpack.c.0.s8 %v643
    %v645 = vlaneseq
    %v646 = vshrl.u32 %v645, 7
    %v647 = vsub.s32 %v644, %v646
    %v648 = vrot.slane %v634, %v647
    %v649 = vcombine.high %v625, 0.0
    %v650 = vcombine.high %v632, 0.0
    %v651 = vcombine.high %v641, 0.0
    %v652 = vcombine.high %v648, 0.0
    %v653 = vcombine.low %v270, %v576
    %v654 = vcombine.high %v270, %v576
    %v656 = vunpack.c.l.s4 1983009808
    %v657 = vunpack.c.0.s8 %v656
    %v658 = vlaneseq
    %v659 = vshrl.u32 %v658, 7
    %v660 = vsub.s32 %v657, %v659
    %v661 = vrot.slane %v653, %v660
    %v663 = vunpack.c.l.s4 1983009808
    %v664 = vunpack.c.0.s8 %v663
    %v665 = vlaneseq
    %v666 = vshrl.u32 %v665, 7
    %v667 = vsub.s32 %v664, %v666
    %v668 = vrot.slane %v654, %v667
    %v669 = vcombine.low %v570, %v582
    %v670 = vcombine.high %v570, %v582
    %v672 = vunpack.c.l.s4 1983009808
    %v673 = vunpack.c.0.s8 %v672
    %v674 = vlaneseq
    %v675 = vshrl.u32 %v674, 7
    %v676 = vsub.s32 %v673, %v675
    %v677 = vrot.slane %v669, %v676
    %v679 = vunpack.c.l.s4 1983009808
    %v680 = vunpack.c.0.s8 %v679
    %v681 = vlaneseq
    %v682 = vshrl.u32 %v681, 7
    %v683 = vsub.s32 %v680, %v682
    %v684 = vrot.slane %v670, %v683
    %v685 = vcombine.low %v661, %v677
    %v686 = vcombine.high %v661, %v677
    %v688 = vunpack.c.l.s4 1934713408
    %v689 = vunpack.c.0.s8 %v688
    %v690 = vlaneseq
    %v691 = vshrl.u32 %v690, 7
    %v692 = vsub.s32 %v689, %v691
    %v693 = vrot.slane %v685, %v692
    %v695 = vunpack.c.l.s4 1934713408
    %v696 = vunpack.c.0.s8 %v695
    %v697 = vlaneseq
    %v698 = vshrl.u32 %v697, 7
    %v699 = vsub.s32 %v696, %v698
    %v700 = vrot.slane %v686, %v699
    %v701 = vcombine.low %v668, %v684
    %v702 = vcombine.high %v668, %v684
    %v704 = vunpack.c.l.s4 1934713408
    %v705 = vunpack.c.0.s8 %v704
    %v706 = vlaneseq
    %v707 = vshrl.u32 %v706, 7
    %v708 = vsub.s32 %v705, %v707
    %v709 = vrot.slane %v701, %v708
    %v711 = vunpack.c.l.s4 1934713408
    %v712 = vunpack.c.0.s8 %v711
    %v713 = vlaneseq
    %v714 = vshrl.u32 %v713, 7
    %v715 = vsub.s32 %v712, %v714
    %v716 = vrot.slane %v702, %v715
    %v717 = vcombine.high %v693, 0.0
    %v718 = vcombine.high %v700, 0.0
    %v719 = vcombine.high %v709, 0.0
    %v720 = vcombine.high %v716, 0.0
    %v721 = vcombine.low %v625, %v632
    %v723 = vunpack.c.l.s4 1983009808
    %v724 = vunpack.c.0.s8 %v723
    %v725 = vlaneseq
    %v726 = vshrl.u32 %v725, 7
    %v727 = vsub.s32 %v724, %v726
    %v728 = vrot.slane %v721, %v727
    %v729 = vcombine.low %v649, %v650
    %v731 = vunpack.c.l.s4 1983009808
    %v732 = vunpack.c.0.s8 %v731
    %v733 = vlaneseq
    %v734 = vshrl.u32 %v733, 7
    %v735 = vsub.s32 %v732, %v734
    %v736 = vrot.slane %v729, %v735
    %v737 = vcombine.low %v641, %v648
    %v739 = vunpack.c.l.s4 1983009808
    %v740 = vunpack.c.0.s8 %v739
    %v741 = vlaneseq
    %v742 = vshrl.u32 %v741, 7
    %v743 = vsub.s32 %v740, %v742
    %v744 = vrot.slane %v737, %v743
    %v745 = vcombine.low %v651, %v652
    %v747 = vunpack.c.l.s4 1983009808
    %v748 = vunpack.c.0.s8 %v747
    %v749 = vlaneseq
    %v750 = vshrl.u32 %v749, 7
    %v751 = vsub.s32 %v748, %v750
    %v752 = vrot.slane %v745, %v751
    %v753 = vcombine.low %v728, %v736
    %v754 = vcombine.high %v728, %v736
    %v756 = vunpack.c.l.s4 1934713408
    %v757 = vunpack.c.0.s8 %v756
    %v758 = vlaneseq
    %v759 = vshrl.u32 %v758, 7
    %v760 = vsub.s32 %v757, %v759
    %v761 = vrot.slane %v753, %v760
    %v763 = vunpack.c.l.s4 1934713408
    %v764 = vunpack.c.0.s8 %v763
    %v765 = vlaneseq
    %v766 = vshrl.u32 %v765, 7
    %v767 = vsub.s32 %v764, %v766
    %v768 = vrot.slane %v754, %v767
    %v769 = vcombine.low %v744, %v752
    %v770 = vcombine.high %v744, %v752
    %v772 = vunpack.c.l.s4 1934713408
    %v773 = vunpack.c.0.s8 %v772
    %v774 = vlaneseq
    %v775 = vshrl.u32 %v774, 7
    %v776 = vsub.s32 %v773, %v775
    %v777 = vrot.slane %v769, %v776
    %v779 = vunpack.c.l.s4 1934713408
    %v780 = vunpack.c.0.s8 %v779
    %v781 = vlaneseq
    %v782 = vshrl.u32 %v781, 7
    %v783 = vsub.s32 %v780, %v782
    %v784 = vrot.slane %v770, %v783
    %v785 = vcombine.low %v761, %v777
    %v786 = vcombine.high %v761, %v777
    %v787 = vcombine.low %v768, %v784
    %v788 = vcombine.high %v768, %v784
    %v789 = vcombine.low %v693, %v700
    %v791 = vunpack.c.l.s4 1983009808
    %v792 = vunpack.c.0.s8 %v791
    %v793 = vlaneseq
    %v794 = vshrl.u32 %v793, 7
    %v795 = vsub.s32 %v792, %v794
    %v796 = vrot.slane %v789, %v795
    %v797 = vcombine.low %v717, %v718
    %v799 = vunpack.c.l.s4 1983009808
    %v800 = vunpack.c.0.s8 %v799
    %v801 = vlaneseq
    %v802 = vshrl.u32 %v801, 7
    %v803 = vsub.s32 %v800, %v802
    %v804 = vrot.slane %v797, %v803
    %v805 = vcombine.low %v709, %v716
    %v807 = vunpack.c.l.s4 1983009808
    %v808 = vunpack.c.0.s8 %v807
    %v809 = vlaneseq
    %v810 = vshrl.u32 %v809, 7
    %v811 = vsub.s32 %v808, %v810
    %v812 = vrot.slane %v805, %v811
    %v813 = vcombine.low %v719, %v720
    %v815 = vunpack.c.l.s4 1983009808
    %v816 = vunpack.c.0.s8 %v815
    %v817 = vlaneseq
    %v818 = vshrl.u32 %v817, 7
    %v819 = vsub.s32 %v816, %v818
    %v820 = vrot.slane %v813, %v819
    %v821 = vcombine.low %v796, %v804
    %v822 = vcombine.high %v796, %v804
    %v824 = vunpack.c.l.s4 1934713408
    %v825 = vunpack.c.0.s8 %v824
    %v826 = vlaneseq
    %v827 = vshrl.u32 %v826, 7
    %v828 = vsub.s32 %v825, %v827
    %v829 = vrot.slane %v821, %v828
    %v831 = vunpack.c.l.s4 1934713408
    %v832 = vunpack.c.0.s8 %v831
    %v833 = vlaneseq
    %v834 = vshrl.u32 %v833, 7
    %v835 = vsub.s32 %v832, %v834
    %v836 = vrot.slane %v822, %v835
    %v837 = vcombine.low %v812, %v820
    %v838 = vcombine.high %v812, %v820
    %v840 = vunpack.c.l.s4 1934713408
    %v841 = vunpack.c.0.s8 %v840
    %v842 = vlaneseq
    %v843 = vshrl.u32 %v842, 7
    %v844 = vsub.s32 %v841, %v843
    %v845 = vrot.slane %v837, %v844
    %v847 = vunpack.c.l.s4 1934713408
    %v848 = vunpack.c.0.s8 %v847
    %v849 = vlaneseq
    %v850 = vshrl.u32 %v849, 7
    %v851 = vsub.s32 %v848, %v850
    %v852 = vrot.slane %v838, %v851
    %v853 = vcombine.low %v829, %v845
    %v854 = vcombine.high %v829, %v845
    %v855 = vcombine.low %v836, %v852
    %v856 = vcombine.high %v836, %v852
    %857 = vrot.lane.b32.xlu0 %v265, 96
    %v858 = vpop.permute.xlu0 %857
    %859 = vrot.lane.b32.xlu0 %v270, 96
    %v860 = vpop.permute.xlu0 %859
    %861 = vrot.lane.b32.xlu0 %v568, 96
    %v862 = vpop.permute.xlu0 %861
    %863 = vrot.lane.b32.xlu0 %v570, 96
    %v864 = vpop.permute.xlu0 %863
    %865 = vrot.lane.b32.xlu0 %v574, 96
    %v866 = vpop.permute.xlu0 %865
    %867 = vrot.lane.b32.xlu0 %v576, 96
    %v868 = vpop.permute.xlu0 %867
    %869 = vrot.lane.b32.xlu0 %v580, 96
    %v870 = vpop.permute.xlu0 %869
    %871 = vrot.lane.b32.xlu0 %v582, 96
    %v872 = vpop.permute.xlu0 %871
    %v881 = vcombine.low %v858, %v866
    %v882 = vcombine.high %v858, %v866
    %v884 = vunpack.c.l.s4 1983009808
    %v885 = vunpack.c.0.s8 %v884
    %v886 = vlaneseq
    %v887 = vshrl.u32 %v886, 7
    %v888 = vsub.s32 %v885, %v887
    %v889 = vrot.slane %v881, %v888
    %v891 = vunpack.c.l.s4 1983009808
    %v892 = vunpack.c.0.s8 %v891
    %v893 = vlaneseq
    %v894 = vshrl.u32 %v893, 7
    %v895 = vsub.s32 %v892, %v894
    %v896 = vrot.slane %v882, %v895
    %v897 = vcombine.low %v862, %v870
    %v898 = vcombine.high %v862, %v870
    %v900 = vunpack.c.l.s4 1983009808
    %v901 = vunpack.c.0.s8 %v900
    %v902 = vlaneseq
    %v903 = vshrl.u32 %v902, 7
    %v904 = vsub.s32 %v901, %v903
    %v905 = vrot.slane %v897, %v904
    %v907 = vunpack.c.l.s4 1983009808
    %v908 = vunpack.c.0.s8 %v907
    %v909 = vlaneseq
    %v910 = vshrl.u32 %v909, 7
    %v911 = vsub.s32 %v908, %v910
    %v912 = vrot.slane %v898, %v911
    %v913 = vcombine.low %v889, %v905
    %v914 = vcombine.high %v889, %v905
    %v916 = vunpack.c.l.s4 1934713408
    %v917 = vunpack.c.0.s8 %v916
    %v918 = vlaneseq
    %v919 = vshrl.u32 %v918, 7
    %v920 = vsub.s32 %v917, %v919
    %v921 = vrot.slane %v913, %v920
    %v923 = vunpack.c.l.s4 1934713408
    %v924 = vunpack.c.0.s8 %v923
    %v925 = vlaneseq
    %v926 = vshrl.u32 %v925, 7
    %v927 = vsub.s32 %v924, %v926
    %v928 = vrot.slane %v914, %v927
    %v929 = vcombine.low %v896, %v912
    %v930 = vcombine.high %v896, %v912
    %v932 = vunpack.c.l.s4 1934713408
    %v933 = vunpack.c.0.s8 %v932
    %v934 = vlaneseq
    %v935 = vshrl.u32 %v934, 7
    %v936 = vsub.s32 %v933, %v935
    %v937 = vrot.slane %v929, %v936
    %v939 = vunpack.c.l.s4 1934713408
    %v940 = vunpack.c.0.s8 %v939
    %v941 = vlaneseq
    %v942 = vshrl.u32 %v941, 7
    %v943 = vsub.s32 %v940, %v942
    %v944 = vrot.slane %v930, %v943
    %v945 = vcombine.high %v921, 0.0
    %v946 = vcombine.high %v928, 0.0
    %v947 = vcombine.high %v937, 0.0
    %v948 = vcombine.high %v944, 0.0
    %v949 = vcombine.low %v860, %v868
    %v950 = vcombine.high %v860, %v868
    %v952 = vunpack.c.l.s4 1983009808
    %v953 = vunpack.c.0.s8 %v952
    %v954 = vlaneseq
    %v955 = vshrl.u32 %v954, 7
    %v956 = vsub.s32 %v953, %v955
    %v957 = vrot.slane %v949, %v956
    %v959 = vunpack.c.l.s4 1983009808
    %v960 = vunpack.c.0.s8 %v959
    %v961 = vlaneseq
    %v962 = vshrl.u32 %v961, 7
    %v963 = vsub.s32 %v960, %v962
    %v964 = vrot.slane %v950, %v963
    %v965 = vcombine.low %v864, %v872
    %v966 = vcombine.high %v864, %v872
    %v968 = vunpack.c.l.s4 1983009808
    %v969 = vunpack.c.0.s8 %v968
    %v970 = vlaneseq
    %v971 = vshrl.u32 %v970, 7
    %v972 = vsub.s32 %v969, %v971
    %v973 = vrot.slane %v965, %v972
    %v975 = vunpack.c.l.s4 1983009808
    %v976 = vunpack.c.0.s8 %v975
    %v977 = vlaneseq
    %v978 = vshrl.u32 %v977, 7
    %v979 = vsub.s32 %v976, %v978
    %v980 = vrot.slane %v966, %v979
    %v981 = vcombine.low %v957, %v973
    %v982 = vcombine.high %v957, %v973
    %v984 = vunpack.c.l.s4 1934713408
    %v985 = vunpack.c.0.s8 %v984
    %v986 = vlaneseq
    %v987 = vshrl.u32 %v986, 7
    %v988 = vsub.s32 %v985, %v987
    %v989 = vrot.slane %v981, %v988
    %v991 = vunpack.c.l.s4 1934713408
    %v992 = vunpack.c.0.s8 %v991
    %v993 = vlaneseq
    %v994 = vshrl.u32 %v993, 7
    %v995 = vsub.s32 %v992, %v994
    %v996 = vrot.slane %v982, %v995
    %v997 = vcombine.low %v964, %v980
    %v998 = vcombine.high %v964, %v980
    %v1000 = vunpack.c.l.s4 1934713408
    %v1001 = vunpack.c.0.s8 %v1000
    %v1002 = vlaneseq
    %v1003 = vshrl.u32 %v1002, 7
    %v1004 = vsub.s32 %v1001, %v1003
    %v1005 = vrot.slane %v997, %v1004
    %v1007 = vunpack.c.l.s4 1934713408
    %v1008 = vunpack.c.0.s8 %v1007
    %v1009 = vlaneseq
    %v1010 = vshrl.u32 %v1009, 7
    %v1011 = vsub.s32 %v1008, %v1010
    %v1012 = vrot.slane %v998, %v1011
    %v1013 = vcombine.high %v989, 0.0
    %v1014 = vcombine.high %v996, 0.0
    %v1015 = vcombine.high %v1005, 0.0
    %v1016 = vcombine.high %v1012, 0.0
    %v1017 = vcombine.low %v921, %v928
    %v1019 = vunpack.c.l.s4 1983009808
    %v1020 = vunpack.c.0.s8 %v1019
    %v1021 = vlaneseq
    %v1022 = vshrl.u32 %v1021, 7
    %v1023 = vsub.s32 %v1020, %v1022
    %v1024 = vrot.slane %v1017, %v1023
    %v1025 = vcombine.low %v945, %v946
    %v1027 = vunpack.c.l.s4 1983009808
    %v1028 = vunpack.c.0.s8 %v1027
    %v1029 = vlaneseq
    %v1030 = vshrl.u32 %v1029, 7
    %v1031 = vsub.s32 %v1028, %v1030
    %v1032 = vrot.slane %v1025, %v1031
    %v1033 = vcombine.low %v937, %v944
    %v1035 = vunpack.c.l.s4 1983009808
    %v1036 = vunpack.c.0.s8 %v1035
    %v1037 = vlaneseq
    %v1038 = vshrl.u32 %v1037, 7
    %v1039 = vsub.s32 %v1036, %v1038
    %v1040 = vrot.slane %v1033, %v1039
    %v1041 = vcombine.low %v947, %v948
    %v1043 = vunpack.c.l.s4 1983009808
    %v1044 = vunpack.c.0.s8 %v1043
    %v1045 = vlaneseq
    %v1046 = vshrl.u32 %v1045, 7
    %v1047 = vsub.s32 %v1044, %v1046
    %v1048 = vrot.slane %v1041, %v1047
    %v1049 = vcombine.low %v1024, %v1032
    %v1050 = vcombine.high %v1024, %v1032
    %v1052 = vunpack.c.l.s4 1934713408
    %v1053 = vunpack.c.0.s8 %v1052
    %v1054 = vlaneseq
    %v1055 = vshrl.u32 %v1054, 7
    %v1056 = vsub.s32 %v1053, %v1055
    %v1057 = vrot.slane %v1049, %v1056
    %v1059 = vunpack.c.l.s4 1934713408
    %v1060 = vunpack.c.0.s8 %v1059
    %v1061 = vlaneseq
    %v1062 = vshrl.u32 %v1061, 7
    %v1063 = vsub.s32 %v1060, %v1062
    %v1064 = vrot.slane %v1050, %v1063
    %v1065 = vcombine.low %v1040, %v1048
    %v1066 = vcombine.high %v1040, %v1048
    %v1068 = vunpack.c.l.s4 1934713408
    %v1069 = vunpack.c.0.s8 %v1068
    %v1070 = vlaneseq
    %v1071 = vshrl.u32 %v1070, 7
    %v1072 = vsub.s32 %v1069, %v1071
    %v1073 = vrot.slane %v1065, %v1072
    %v1075 = vunpack.c.l.s4 1934713408
    %v1076 = vunpack.c.0.s8 %v1075
    %v1077 = vlaneseq
    %v1078 = vshrl.u32 %v1077, 7
    %v1079 = vsub.s32 %v1076, %v1078
    %v1080 = vrot.slane %v1066, %v1079
    %v1081 = vcombine.low %v1057, %v1073
    %v1082 = vcombine.high %v1057, %v1073
    %v1083 = vcombine.low %v1064, %v1080
    %v1084 = vcombine.high %v1064, %v1080
    %v1085 = vcombine.low %v989, %v996
    %v1087 = vunpack.c.l.s4 1983009808
    %v1088 = vunpack.c.0.s8 %v1087
    %v1089 = vlaneseq
    %v1090 = vshrl.u32 %v1089, 7
    %v1091 = vsub.s32 %v1088, %v1090
    %v1092 = vrot.slane %v1085, %v1091
    %v1093 = vcombine.low %v1013, %v1014
    %v1095 = vunpack.c.l.s4 1983009808
    %v1096 = vunpack.c.0.s8 %v1095
    %v1097 = vlaneseq
    %v1098 = vshrl.u32 %v1097, 7
    %v1099 = vsub.s32 %v1096, %v1098
    %v1100 = vrot.slane %v1093, %v1099
    %v1101 = vcombine.low %v1005, %v1012
    %v1103 = vunpack.c.l.s4 1983009808
    %v1104 = vunpack.c.0.s8 %v1103
    %v1105 = vlaneseq
    %v1106 = vshrl.u32 %v1105, 7
    %v1107 = vsub.s32 %v1104, %v1106
    %v1108 = vrot.slane %v1101, %v1107
    %v1109 = vcombine.low %v1015, %v1016
    %v1111 = vunpack.c.l.s4 1983009808
    %v1112 = vunpack.c.0.s8 %v1111
    %v1113 = vlaneseq
    %v1114 = vshrl.u32 %v1113, 7
    %v1115 = vsub.s32 %v1112, %v1114
    %v1116 = vrot.slane %v1109, %v1115
    %v1117 = vcombine.low %v1092, %v1100
    %v1118 = vcombine.high %v1092, %v1100
    %v1120 = vunpack.c.l.s4 1934713408
    %v1121 = vunpack.c.0.s8 %v1120
    %v1122 = vlaneseq
    %v1123 = vshrl.u32 %v1122, 7
    %v1124 = vsub.s32 %v1121, %v1123
    %v1125 = vrot.slane %v1117, %v1124
    %v1127 = vunpack.c.l.s4 1934713408
    %v1128 = vunpack.c.0.s8 %v1127
    %v1129 = vlaneseq
    %v1130 = vshrl.u32 %v1129, 7
    %v1131 = vsub.s32 %v1128, %v1130
    %v1132 = vrot.slane %v1118, %v1131
    %v1133 = vcombine.low %v1108, %v1116
    %v1134 = vcombine.high %v1108, %v1116
    %v1136 = vunpack.c.l.s4 1934713408
    %v1137 = vunpack.c.0.s8 %v1136
    %v1138 = vlaneseq
    %v1139 = vshrl.u32 %v1138, 7
    %v1140 = vsub.s32 %v1137, %v1139
    %v1141 = vrot.slane %v1133, %v1140
    %v1143 = vunpack.c.l.s4 1934713408
    %v1144 = vunpack.c.0.s8 %v1143
    %v1145 = vlaneseq
    %v1146 = vshrl.u32 %v1145, 7
    %v1147 = vsub.s32 %v1144, %v1146
    %v1148 = vrot.slane %v1134, %v1147
    %v1149 = vcombine.low %v1125, %v1141
    %v1150 = vcombine.high %v1125, %v1141
    %v1151 = vcombine.low %v1132, %v1148
    %v1152 = vcombine.high %v1132, %v1148
    %vm1153 = vcmask 64512
    %v1155 = vsel %vm1153, %v493, 0
    %v1158 = vsel %vm1153, %v785, 0
    %1160 = vmatprep.subr.mxu0 0.0
    %1161 = vmatpush1.xpose.msra.mxu0 %v1158
    %1162 = vmatprep.subr.mxu0 0.0
    %1163 = vmatpush1.xpose.msra.mxu0 0.0
    %1164 = vmatprep.subr.mxu0 0.0
    %1165 = vmatpush1.xpose.msra.mxu0 0.0
    %1166 = vmatprep.subr.mxu0 0.0
    %1167 = vmatpush1.xpose.msra.mxu0 0.0
    %1168 = vmatprep.subr.mxu0 0.0
    %1169 = vmatpush1.xpose.msra.mxu0 0.0
    %1170 = vmatprep.subr.mxu0 0.0
    %1171 = vmatpush1.xpose.msra.mxu0 0.0
    %1172 = vmatprep.subr.mxu0 0.0
    %1173 = vmatpush1.xpose.msra.mxu0 0.0
    %1174 = vmatprep.subr.mxu0 0.0
    %1175 = vmatpush1.xpose.msra.mxu0 0.0
    %1176 = vmatprep.subr.mxu0 0.0
    %1177 = vmatpush1.xpose.msra.mxu0 0.0
    %1178 = vmatprep.subr.mxu0 0.0
    %1179 = vmatpush1.xpose.msra.mxu0 0.0
    %1180 = vmatprep.subr.mxu0 0.0
    %1181 = vmatpush1.xpose.msra.mxu0 0.0
    %1182 = vmatprep.subr.mxu0 0.0
    %1183 = vmatpush1.xpose.msra.mxu0 0.0
    %1184 = vmatprep.subr.mxu0 0.0
    %1185 = vmatpush1.xpose.msra.mxu0 0.0
    %1186 = vmatprep.subr.mxu0 0.0
    %1187 = vmatpush1.xpose.msra.mxu0 0.0
    %1188 = vmatprep.subr.mxu0 0.0
    %1189 = vmatpush1.xpose.msra.mxu0 0.0
    %1190 = vmatprep.subr.mxu0 0.0
    %1191 = vmatpush1.xpose.msra.mxu0 0.0
    %1192 = vmatprep.subr.mxu0 0.0
    %1193 = vmatpush1.xpose.msra.mxu0 0.0
    %1194 = vmatprep.subr.mxu0 0.0
    %1195 = vmatpush1.xpose.msra.mxu0 0.0
    %1196 = vmatprep.subr.mxu0 0.0
    %1197 = vmatpush1.xpose.msra.mxu0 0.0
    %1198 = vmatprep.subr.mxu0 0.0
    %1199 = vmatpush1.xpose.msra.mxu0 0.0
    %1200 = vmatprep.subr.mxu0 0.0
    %1201 = vmatpush1.xpose.msra.mxu0 0.0
    %1202 = vmatprep.subr.mxu0 0.0
    %1203 = vmatpush1.xpose.msra.mxu0 0.0
    %1204 = vmatprep.subr.mxu0 0.0
    %1205 = vmatpush1.xpose.msra.mxu0 0.0
    %1206 = vmatprep.subr.mxu0 0.0
    %1207 = vmatpush1.xpose.msra.mxu0 0.0
    %1208 = vmatprep.subr.mxu0 0.0
    %1209 = vmatpush1.xpose.msra.mxu0 0.0
    %1210 = vmatprep.subr.mxu0 0.0
    %1211 = vmatpush1.xpose.msra.mxu0 0.0
    %1212 = vmatprep.subr.mxu0 0.0
    %1213 = vmatpush1.xpose.msra.mxu0 0.0
    %1214 = vmatprep.subr.mxu0 0.0
    %1215 = vmatpush1.xpose.msra.mxu0 0.0
    %1216 = vmatprep.subr.mxu0 0.0
    %1217 = vmatpush1.xpose.msra.mxu0 0.0
    %1218 = vmatprep.subr.mxu0 0.0
    %1219 = vmatpush1.xpose.msra.mxu0 0.0
    %1220 = vmatprep.subr.mxu0 0.0
    %1221 = vmatpush1.xpose.msra.mxu0 0.0
    %1222 = vmatprep.subr.mxu0 0.0
    %1223 = vmatpush1.xpose.msra.mxu0 0.0
    %1224 = vmatprep.mubr.f32.mxu0 0.0
    %1225 = vmatmul.mubr.f32.gmra.mrb[0].mxu0 %v1155
    %v1226 = vpop.f32.mrb[0].mxu0
    %v1227 = vadd.f32 0.0, %v1226
    %v1228 = vpop.f32.mrb[0].mxu0
    %1229 = vdwg.mxu0
    %v1231 = vsel %vm1153, %v494, 0
    %v1234 = vsel %vm1153, %v786, 0
    %1236 = vmatprep.subr.mxu0 0.0
    %1237 = vmatpush1.xpose.msra.mxu0 %v1234
    %1238 = vmatprep.subr.mxu0 0.0
    %1239 = vmatpush1.xpose.msra.mxu0 0.0
    %1240 = vmatprep.subr.mxu0 0.0
    %1241 = vmatpush1.xpose.msra.mxu0 0.0
    %1242 = vmatprep.subr.mxu0 0.0
    %1243 = vmatpush1.xpose.msra.mxu0 0.0
    %1244 = vmatprep.subr.mxu0 0.0
    %1245 = vmatpush1.xpose.msra.mxu0 0.0
    %1246 = vmatprep.subr.mxu0 0.0
    %1247 = vmatpush1.xpose.msra.mxu0 0.0
    %1248 = vmatprep.subr.mxu0 0.0
    %1249 = vmatpush1.xpose.msra.mxu0 0.0
    %1250 = vmatprep.subr.mxu0 0.0
    %1251 = vmatpush1.xpose.msra.mxu0 0.0
    %1252 = vmatprep.subr.mxu0 0.0
    %1253 = vmatpush1.xpose.msra.mxu0 0.0
    %1254 = vmatprep.subr.mxu0 0.0
    %1255 = vmatpush1.xpose.msra.mxu0 0.0
    %1256 = vmatprep.subr.mxu0 0.0
    %1257 = vmatpush1.xpose.msra.mxu0 0.0
    %1258 = vmatprep.subr.mxu0 0.0
    %1259 = vmatpush1.xpose.msra.mxu0 0.0
    %1260 = vmatprep.subr.mxu0 0.0
    %1261 = vmatpush1.xpose.msra.mxu0 0.0
    %1262 = vmatprep.subr.mxu0 0.0
    %1263 = vmatpush1.xpose.msra.mxu0 0.0
    %1264 = vmatprep.subr.mxu0 0.0
    %1265 = vmatpush1.xpose.msra.mxu0 0.0
    %1266 = vmatprep.subr.mxu0 0.0
    %1267 = vmatpush1.xpose.msra.mxu0 0.0
    %1268 = vmatprep.subr.mxu0 0.0
    %1269 = vmatpush1.xpose.msra.mxu0 0.0
    %1270 = vmatprep.subr.mxu0 0.0
    %1271 = vmatpush1.xpose.msra.mxu0 0.0
    %1272 = vmatprep.subr.mxu0 0.0
    %1273 = vmatpush1.xpose.msra.mxu0 0.0
    %1274 = vmatprep.subr.mxu0 0.0
    %1275 = vmatpush1.xpose.msra.mxu0 0.0
    %1276 = vmatprep.subr.mxu0 0.0
    %1277 = vmatpush1.xpose.msra.mxu0 0.0
    %1278 = vmatprep.subr.mxu0 0.0
    %1279 = vmatpush1.xpose.msra.mxu0 0.0
    %1280 = vmatprep.subr.mxu0 0.0
    %1281 = vmatpush1.xpose.msra.mxu0 0.0
    %1282 = vmatprep.subr.mxu0 0.0
    %1283 = vmatpush1.xpose.msra.mxu0 0.0
    %1284 = vmatprep.subr.mxu0 0.0
    %1285 = vmatpush1.xpose.msra.mxu0 0.0
    %1286 = vmatprep.subr.mxu0 0.0
    %1287 = vmatpush1.xpose.msra.mxu0 0.0
    %1288 = vmatprep.subr.mxu0 0.0
    %1289 = vmatpush1.xpose.msra.mxu0 0.0
    %1290 = vmatprep.subr.mxu0 0.0
    %1291 = vmatpush1.xpose.msra.mxu0 0.0
    %1292 = vmatprep.subr.mxu0 0.0
    %1293 = vmatpush1.xpose.msra.mxu0 0.0
    %1294 = vmatprep.subr.mxu0 0.0
    %1295 = vmatpush1.xpose.msra.mxu0 0.0
    %1296 = vmatprep.subr.mxu0 0.0
    %1297 = vmatpush1.xpose.msra.mxu0 0.0
    %1298 = vmatprep.subr.mxu0 0.0
    %1299 = vmatpush1.xpose.msra.mxu0 0.0
    %1300 = vmatprep.mubr.f32.mxu0 0.0
    %1301 = vmatmul.mubr.f32.gmra.mrb[0].mxu0 %v1231
    %v1302 = vpop.f32.mrb[0].mxu0
    %v1303 = vadd.f32 0.0, %v1302
    %v1304 = vpop.f32.mrb[0].mxu0
    %1305 = vdwg.mxu0
    %v1307 = vsel %vm1153, %v495, 0
    %v1310 = vsel %vm1153, %v787, 0
    %1312 = vmatprep.subr.mxu0 0.0
    %1313 = vmatpush1.xpose.msra.mxu0 %v1310
    %1314 = vmatprep.subr.mxu0 0.0
    %1315 = vmatpush1.xpose.msra.mxu0 0.0
    %1316 = vmatprep.subr.mxu0 0.0
    %1317 = vmatpush1.xpose.msra.mxu0 0.0
    %1318 = vmatprep.subr.mxu0 0.0
    %1319 = vmatpush1.xpose.msra.mxu0 0.0
    %1320 = vmatprep.subr.mxu0 0.0
    %1321 = vmatpush1.xpose.msra.mxu0 0.0
    %1322 = vmatprep.subr.mxu0 0.0
    %1323 = vmatpush1.xpose.msra.mxu0 0.0
    %1324 = vmatprep.subr.mxu0 0.0
    %1325 = vmatpush1.xpose.msra.mxu0 0.0
    %1326 = vmatprep.subr.mxu0 0.0
    %1327 = vmatpush1.xpose.msra.mxu0 0.0
    %1328 = vmatprep.subr.mxu0 0.0
    %1329 = vmatpush1.xpose.msra.mxu0 0.0
    %1330 = vmatprep.subr.mxu0 0.0
    %1331 = vmatpush1.xpose.msra.mxu0 0.0
    %1332 = vmatprep.subr.mxu0 0.0
    %1333 = vmatpush1.xpose.msra.mxu0 0.0
    %1334 = vmatprep.subr.mxu0 0.0
    %1335 = vmatpush1.xpose.msra.mxu0 0.0
    %1336 = vmatprep.subr.mxu0 0.0
    %1337 = vmatpush1.xpose.msra.mxu0 0.0
    %1338 = vmatprep.subr.mxu0 0.0
    %1339 = vmatpush1.xpose.msra.mxu0 0.0
    %1340 = vmatprep.subr.mxu0 0.0
    %1341 = vmatpush1.xpose.msra.mxu0 0.0
    %1342 = vmatprep.subr.mxu0 0.0
    %1343 = vmatpush1.xpose.msra.mxu0 0.0
    %1344 = vmatprep.subr.mxu0 0.0
    %1345 = vmatpush1.xpose.msra.mxu0 0.0
    %1346 = vmatprep.subr.mxu0 0.0
    %1347 = vmatpush1.xpose.msra.mxu0 0.0
    %1348 = vmatprep.subr.mxu0 0.0
    %1349 = vmatpush1.xpose.msra.mxu0 0.0
    %1350 = vmatprep.subr.mxu0 0.0
    %1351 = vmatpush1.xpose.msra.mxu0 0.0
    %1352 = vmatprep.subr.mxu0 0.0
    %1353 = vmatpush1.xpose.msra.mxu0 0.0
    %1354 = vmatprep.subr.mxu0 0.0
    %1355 = vmatpush1.xpose.msra.mxu0 0.0
    %1356 = vmatprep.subr.mxu0 0.0
    %1357 = vmatpush1.xpose.msra.mxu0 0.0
    %1358 = vmatprep.subr.mxu0 0.0
    %1359 = vmatpush1.xpose.msra.mxu0 0.0
    %1360 = vmatprep.subr.mxu0 0.0
    %1361 = vmatpush1.xpose.msra.mxu0 0.0
    %1362 = vmatprep.subr.mxu0 0.0
    %1363 = vmatpush1.xpose.msra.mxu0 0.0
    %1364 = vmatprep.subr.mxu0 0.0
    %1365 = vmatpush1.xpose.msra.mxu0 0.0
    %1366 = vmatprep.subr.mxu0 0.0
    %1367 = vmatpush1.xpose.msra.mxu0 0.0
    %1368 = vmatprep.subr.mxu0 0.0
    %1369 = vmatpush1.xpose.msra.mxu0 0.0
    %1370 = vmatprep.subr.mxu0 0.0
    %1371 = vmatpush1.xpose.msra.mxu0 0.0
    %1372 = vmatprep.subr.mxu0 0.0
    %1373 = vmatpush1.xpose.msra.mxu0 0.0
    %1374 = vmatprep.subr.mxu0 0.0
    %1375 = vmatpush1.xpose.msra.mxu0 0.0
    %1376 = vmatprep.mubr.f32.mxu0 0.0
    %1377 = vmatmul.mubr.f32.gmra.mrb[0].mxu0 %v1307
    %v1378 = vpop.f32.mrb[0].mxu0
    %v1379 = vadd.f32 0.0, %v1378
    %v1380 = vpop.f32.mrb[0].mxu0
    %1381 = vdwg.mxu0
    %v1383 = vsel %vm1153, %v496, 0
    %v1386 = vsel %vm1153, %v788, 0
    %1388 = vmatprep.subr.mxu0 0.0
    %1389 = vmatpush1.xpose.msra.mxu0 %v1386
    %1390 = vmatprep.subr.mxu0 0.0
    %1391 = vmatpush1.xpose.msra.mxu0 0.0
    %1392 = vmatprep.subr.mxu0 0.0
    %1393 = vmatpush1.xpose.msra.mxu0 0.0
    %1394 = vmatprep.subr.mxu0 0.0
    %1395 = vmatpush1.xpose.msra.mxu0 0.0
    %1396 = vmatprep.subr.mxu0 0.0
    %1397 = vmatpush1.xpose.msra.mxu0 0.0
    %1398 = vmatprep.subr.mxu0 0.0
    %1399 = vmatpush1.xpose.msra.mxu0 0.0
    %1400 = vmatprep.subr.mxu0 0.0
    %1401 = vmatpush1.xpose.msra.mxu0 0.0
    %1402 = vmatprep.subr.mxu0 0.0
    %1403 = vmatpush1.xpose.msra.mxu0 0.0
    %1404 = vmatprep.subr.mxu0 0.0
    %1405 = vmatpush1.xpose.msra.mxu0 0.0
    %1406 = vmatprep.subr.mxu0 0.0
    %1407 = vmatpush1.xpose.msra.mxu0 0.0
    %1408 = vmatprep.subr.mxu0 0.0
    %1409 = vmatpush1.xpose.msra.mxu0 0.0
    %1410 = vmatprep.subr.mxu0 0.0
    %1411 = vmatpush1.xpose.msra.mxu0 0.0
    %1412 = vmatprep.subr.mxu0 0.0
    %1413 = vmatpush1.xpose.msra.mxu0 0.0
    %1414 = vmatprep.subr.mxu0 0.0
    %1415 = vmatpush1.xpose.msra.mxu0 0.0
    %1416 = vmatprep.subr.mxu0 0.0
    %1417 = vmatpush1.xpose.msra.mxu0 0.0
    %1418 = vmatprep.subr.mxu0 0.0
    %1419 = vmatpush1.xpose.msra.mxu0 0.0
    %1420 = vmatprep.subr.mxu0 0.0
    %1421 = vmatpush1.xpose.msra.mxu0 0.0
    %1422 = vmatprep.subr.mxu0 0.0
    %1423 = vmatpush1.xpose.msra.mxu0 0.0
    %1424 = vmatprep.subr.mxu0 0.0
    %1425 = vmatpush1.xpose.msra.mxu0 0.0
    %1426 = vmatprep.subr.mxu0 0.0
    %1427 = vmatpush1.xpose.msra.mxu0 0.0
    %1428 = vmatprep.subr.mxu0 0.0
    %1429 = vmatpush1.xpose.msra.mxu0 0.0
    %1430 = vmatprep.subr.mxu0 0.0
    %1431 = vmatpush1.xpose.msra.mxu0 0.0
    %1432 = vmatprep.subr.mxu0 0.0
    %1433 = vmatpush1.xpose.msra.mxu0 0.0
    %1434 = vmatprep.subr.mxu0 0.0
    %1435 = vmatpush1.xpose.msra.mxu0 0.0
    %1436 = vmatprep.subr.mxu0 0.0
    %1437 = vmatpush1.xpose.msra.mxu0 0.0
    %1438 = vmatprep.subr.mxu0 0.0
    %1439 = vmatpush1.xpose.msra.mxu0 0.0
    %1440 = vmatprep.subr.mxu0 0.0
    %1441 = vmatpush1.xpose.msra.mxu0 0.0
    %1442 = vmatprep.subr.mxu0 0.0
    %1443 = vmatpush1.xpose.msra.mxu0 0.0
    %1444 = vmatprep.subr.mxu0 0.0
    %1445 = vmatpush1.xpose.msra.mxu0 0.0
    %1446 = vmatprep.subr.mxu0 0.0
    %1447 = vmatpush1.xpose.msra.mxu0 0.0
    %1448 = vmatprep.subr.mxu0 0.0
    %1449 = vmatpush1.xpose.msra.mxu0 0.0
    %1450 = vmatprep.subr.mxu0 0.0
    %1451 = vmatpush1.xpose.msra.mxu0 0.0
    %1452 = vmatprep.mubr.f32.mxu0 0.0
    %1453 = vmatmul.mubr.f32.gmra.mrb[0].mxu0 %v1383
    %v1454 = vpop.f32.mrb[0].mxu0
    %v1455 = vadd.f32 0.0, %v1454
    %v1456 = vpop.f32.mrb[0].mxu0
    %1457 = vdwg.mxu0
    %v1459 = vsel %vm1153, %v561, 0
    %v1462 = vsel %vm1153, %v853, 0
    %1464 = vmatprep.subr.mxu0 0.0
    %1465 = vmatpush1.xpose.msra.mxu0 %v1462
    %1466 = vmatprep.subr.mxu0 0.0
    %1467 = vmatpush1.xpose.msra.mxu0 0.0
    %1468 = vmatprep.subr.mxu0 0.0
    %1469 = vmatpush1.xpose.msra.mxu0 0.0
    %1470 = vmatprep.subr.mxu0 0.0
    %1471 = vmatpush1.xpose.msra.mxu0 0.0
    %1472 = vmatprep.subr.mxu0 0.0
    %1473 = vmatpush1.xpose.msra.mxu0 0.0
    %1474 = vmatprep.subr.mxu0 0.0
    %1475 = vmatpush1.xpose.msra.mxu0 0.0
    %1476 = vmatprep.subr.mxu0 0.0
    %1477 = vmatpush1.xpose.msra.mxu0 0.0
    %1478 = vmatprep.subr.mxu0 0.0
    %1479 = vmatpush1.xpose.msra.mxu0 0.0
    %1480 = vmatprep.subr.mxu0 0.0
    %1481 = vmatpush1.xpose.msra.mxu0 0.0
    %1482 = vmatprep.subr.mxu0 0.0
    %1483 = vmatpush1.xpose.msra.mxu0 0.0
    %1484 = vmatprep.subr.mxu0 0.0
    %1485 = vmatpush1.xpose.msra.mxu0 0.0
    %1486 = vmatprep.subr.mxu0 0.0
    %1487 = vmatpush1.xpose.msra.mxu0 0.0
    %1488 = vmatprep.subr.mxu0 0.0
    %1489 = vmatpush1.xpose.msra.mxu0 0.0
    %1490 = vmatprep.subr.mxu0 0.0
    %1491 = vmatpush1.xpose.msra.mxu0 0.0
    %1492 = vmatprep.subr.mxu0 0.0
    %1493 = vmatpush1.xpose.msra.mxu0 0.0
    %1494 = vmatprep.subr.mxu0 0.0
    %1495 = vmatpush1.xpose.msra.mxu0 0.0
    %1496 = vmatprep.subr.mxu0 0.0
    %1497 = vmatpush1.xpose.msra.mxu0 0.0
    %1498 = vmatprep.subr.mxu0 0.0
    %1499 = vmatpush1.xpose.msra.mxu0 0.0
    %1500 = vmatprep.subr.mxu0 0.0
    %1501 = vmatpush1.xpose.msra.mxu0 0.0
    %1502 = vmatprep.subr.mxu0 0.0
    %1503 = vmatpush1.xpose.msra.mxu0 0.0
    %1504 = vmatprep.subr.mxu0 0.0
    %1505 = vmatpush1.xpose.msra.mxu0 0.0
    %1506 = vmatprep.subr.mxu0 0.0
    %1507 = vmatpush1.xpose.msra.mxu0 0.0
    %1508 = vmatprep.subr.mxu0 0.0
    %1509 = vmatpush1.xpose.msra.mxu0 0.0
    %1510 = vmatprep.subr.mxu0 0.0
    %1511 = vmatpush1.xpose.msra.mxu0 0.0
    %1512 = vmatprep.subr.mxu0 0.0
    %1513 = vmatpush1.xpose.msra.mxu0 0.0
    %1514 = vmatprep.subr.mxu0 0.0
    %1515 = vmatpush1.xpose.msra.mxu0 0.0
    %1516 = vmatprep.subr.mxu0 0.0
    %1517 = vmatpush1.xpose.msra.mxu0 0.0
    %1518 = vmatprep.subr.mxu0 0.0
    %1519 = vmatpush1.xpose.msra.mxu0 0.0
    %1520 = vmatprep.subr.mxu0 0.0
    %1521 = vmatpush1.xpose.msra.mxu0 0.0
    %1522 = vmatprep.subr.mxu0 0.0
    %1523 = vmatpush1.xpose.msra.mxu0 0.0
    %1524 = vmatprep.subr.mxu0 0.0
    %1525 = vmatpush1.xpose.msra.mxu0 0.0
    %1526 = vmatprep.subr.mxu0 0.0
    %1527 = vmatpush1.xpose.msra.mxu0 0.0
    %1528 = vmatprep.mubr.f32.mxu0 0.0
    %1529 = vmatmul.mubr.f32.gmra.mrb[0].mxu0 %v1459
    %v1530 = vpop.f32.mrb[0].mxu0
    %v1531 = vadd.f32 0.0, %v1530
    %v1532 = vpop.f32.mrb[0].mxu0
    %1533 = vdwg.mxu0
    %v1535 = vsel %vm1153, %v562, 0
    %v1538 = vsel %vm1153, %v854, 0
    %1540 = vmatprep.subr.mxu0 0.0
    %1541 = vmatpush1.xpose.msra.mxu0 %v1538
    %1542 = vmatprep.subr.mxu0 0.0
    %1543 = vmatpush1.xpose.msra.mxu0 0.0
    %1544 = vmatprep.subr.mxu0 0.0
    %1545 = vmatpush1.xpose.msra.mxu0 0.0
    %1546 = vmatprep.subr.mxu0 0.0
    %1547 = vmatpush1.xpose.msra.mxu0 0.0
    %1548 = vmatprep.subr.mxu0 0.0
    %1549 = vmatpush1.xpose.msra.mxu0 0.0
    %1550 = vmatprep.subr.mxu0 0.0
    %1551 = vmatpush1.xpose.msra.mxu0 0.0
    %1552 = vmatprep.subr.mxu0 0.0
    %1553 = vmatpush1.xpose.msra.mxu0 0.0
    %1554 = vmatprep.subr.mxu0 0.0
    %1555 = vmatpush1.xpose.msra.mxu0 0.0
    %1556 = vmatprep.subr.mxu0 0.0
    %1557 = vmatpush1.xpose.msra.mxu0 0.0
    %1558 = vmatprep.subr.mxu0 0.0
    %1559 = vmatpush1.xpose.msra.mxu0 0.0
    %1560 = vmatprep.subr.mxu0 0.0
    %1561 = vmatpush1.xpose.msra.mxu0 0.0
    %1562 = vmatprep.subr.mxu0 0.0
    %1563 = vmatpush1.xpose.msra.mxu0 0.0
    %1564 = vmatprep.subr.mxu0 0.0
    %1565 = vmatpush1.xpose.msra.mxu0 0.0
    %1566 = vmatprep.subr.mxu0 0.0
    %1567 = vmatpush1.xpose.msra.mxu0 0.0
    %1568 = vmatprep.subr.mxu0 0.0
    %1569 = vmatpush1.xpose.msra.mxu0 0.0
    %1570 = vmatprep.subr.mxu0 0.0
    %1571 = vmatpush1.xpose.msra.mxu0 0.0
    %1572 = vmatprep.subr.mxu0 0.0
    %1573 = vmatpush1.xpose.msra.mxu0 0.0
    %1574 = vmatprep.subr.mxu0 0.0
    %1575 = vmatpush1.xpose.msra.mxu0 0.0
    %1576 = vmatprep.subr.mxu0 0.0
    %1577 = vmatpush1.xpose.msra.mxu0 0.0
    %1578 = vmatprep.subr.mxu0 0.0
    %1579 = vmatpush1.xpose.msra.mxu0 0.0
    %1580 = vmatprep.subr.mxu0 0.0
    %1581 = vmatpush1.xpose.msra.mxu0 0.0
    %1582 = vmatprep.subr.mxu0 0.0
    %1583 = vmatpush1.xpose.msra.mxu0 0.0
    %1584 = vmatprep.subr.mxu0 0.0
    %1585 = vmatpush1.xpose.msra.mxu0 0.0
    %1586 = vmatprep.subr.mxu0 0.0
    %1587 = vmatpush1.xpose.msra.mxu0 0.0
    %1588 = vmatprep.subr.mxu0 0.0
    %1589 = vmatpush1.xpose.msra.mxu0 0.0
    %1590 = vmatprep.subr.mxu0 0.0
    %1591 = vmatpush1.xpose.msra.mxu0 0.0
    %1592 = vmatprep.subr.mxu0 0.0
    %1593 = vmatpush1.xpose.msra.mxu0 0.0
    %1594 = vmatprep.subr.mxu0 0.0
    %1595 = vmatpush1.xpose.msra.mxu0 0.0
    %1596 = vmatprep.subr.mxu0 0.0
    %1597 = vmatpush1.xpose.msra.mxu0 0.0
    %1598 = vmatprep.subr.mxu0 0.0
    %1599 = vmatpush1.xpose.msra.mxu0 0.0
    %1600 = vmatprep.subr.mxu0 0.0
    %1601 = vmatpush1.xpose.msra.mxu0 0.0
    %1602 = vmatprep.subr.mxu0 0.0
    %1603 = vmatpush1.xpose.msra.mxu0 0.0
    %1604 = vmatprep.mubr.f32.mxu0 0.0
    %1605 = vmatmul.mubr.f32.gmra.mrb[0].mxu0 %v1535
    %v1606 = vpop.f32.mrb[0].mxu0
    %v1607 = vadd.f32 0.0, %v1606
    %v1608 = vpop.f32.mrb[0].mxu0
    %1609 = vdwg.mxu0
    %v1611 = vsel %vm1153, %v563, 0
    %v1614 = vsel %vm1153, %v855, 0
    %1616 = vmatprep.subr.mxu0 0.0
    %1617 = vmatpush1.xpose.msra.mxu0 %v1614
    %1618 = vmatprep.subr.mxu0 0.0
    %1619 = vmatpush1.xpose.msra.mxu0 0.0
    %1620 = vmatprep.subr.mxu0 0.0
    %1621 = vmatpush1.xpose.msra.mxu0 0.0
    %1622 = vmatprep.subr.mxu0 0.0
    %1623 = vmatpush1.xpose.msra.mxu0 0.0
    %1624 = vmatprep.subr.mxu0 0.0
    %1625 = vmatpush1.xpose.msra.mxu0 0.0
    %1626 = vmatprep.subr.mxu0 0.0
    %1627 = vmatpush1.xpose.msra.mxu0 0.0
    %1628 = vmatprep.subr.mxu0 0.0
    %1629 = vmatpush1.xpose.msra.mxu0 0.0
    %1630 = vmatprep.subr.mxu0 0.0
    %1631 = vmatpush1.xpose.msra.mxu0 0.0
    %1632 = vmatprep.subr.mxu0 0.0
    %1633 = vmatpush1.xpose.msra.mxu0 0.0
    %1634 = vmatprep.subr.mxu0 0.0
    %1635 = vmatpush1.xpose.msra.mxu0 0.0
    %1636 = vmatprep.subr.mxu0 0.0
    %1637 = vmatpush1.xpose.msra.mxu0 0.0
    %1638 = vmatprep.subr.mxu0 0.0
    %1639 = vmatpush1.xpose.msra.mxu0 0.0
    %1640 = vmatprep.subr.mxu0 0.0
    %1641 = vmatpush1.xpose.msra.mxu0 0.0
    %1642 = vmatprep.subr.mxu0 0.0
    %1643 = vmatpush1.xpose.msra.mxu0 0.0
    %1644 = vmatprep.subr.mxu0 0.0
    %1645 = vmatpush1.xpose.msra.mxu0 0.0
    %1646 = vmatprep.subr.mxu0 0.0
    %1647 = vmatpush1.xpose.msra.mxu0 0.0
    %1648 = vmatprep.subr.mxu0 0.0
    %1649 = vmatpush1.xpose.msra.mxu0 0.0
    %1650 = vmatprep.subr.mxu0 0.0
    %1651 = vmatpush1.xpose.msra.mxu0 0.0
    %1652 = vmatprep.subr.mxu0 0.0
    %1653 = vmatpush1.xpose.msra.mxu0 0.0
    %1654 = vmatprep.subr.mxu0 0.0
    %1655 = vmatpush1.xpose.msra.mxu0 0.0
    %1656 = vmatprep.subr.mxu0 0.0
    %1657 = vmatpush1.xpose.msra.mxu0 0.0
    %1658 = vmatprep.subr.mxu0 0.0
    %1659 = vmatpush1.xpose.msra.mxu0 0.0
    %1660 = vmatprep.subr.mxu0 0.0
    %1661 = vmatpush1.xpose.msra.mxu0 0.0
    %1662 = vmatprep.subr.mxu0 0.0
    %1663 = vmatpush1.xpose.msra.mxu0 0.0
    %1664 = vmatprep.subr.mxu0 0.0
    %1665 = vmatpush1.xpose.msra.mxu0 0.0
    %1666 = vmatprep.subr.mxu0 0.0
    %1667 = vmatpush1.xpose.msra.mxu0 0.0
    %1668 = vmatprep.subr.mxu0 0.0
    %1669 = vmatpush1.xpose.msra.mxu0 0.0
    %1670 = vmatprep.subr.mxu0 0.0
    %1671 = vmatpush1.xpose.msra.mxu0 0.0
    %1672 = vmatprep.subr.mxu0 0.0
    %1673 = vmatpush1.xpose.msra.mxu0 0.0
    %1674 = vmatprep.subr.mxu0 0.0
    %1675 = vmatpush1.xpose.msra.mxu0 0.0
    %1676 = vmatprep.subr.mxu0 0.0
    %1677 = vmatpush1.xpose.msra.mxu0 0.0
    %1678 = vmatprep.subr.mxu0 0.0
    %1679 = vmatpush1.xpose.msra.mxu0 0.0
    %1680 = vmatprep.mubr.f32.mxu0 0.0
    %1681 = vmatmul.mubr.f32.gmra.mrb[0].mxu0 %v1611
    %v1682 = vpop.f32.mrb[0].mxu0
    %v1683 = vadd.f32 0.0, %v1682
    %v1684 = vpop.f32.mrb[0].mxu0
    %1685 = vdwg.mxu0
    %v1687 = vsel %vm1153, %v564, 0
    %v1690 = vsel %vm1153, %v856, 0
    %1692 = vmatprep.subr.mxu0 0.0
    %1693 = vmatpush1.xpose.msra.mxu0 %v1690
    %1694 = vmatprep.subr.mxu0 0.0
    %1695 = vmatpush1.xpose.msra.mxu0 0.0
    %1696 = vmatprep.subr.mxu0 0.0
    %1697 = vmatpush1.xpose.msra.mxu0 0.0
    %1698 = vmatprep.subr.mxu0 0.0
    %1699 = vmatpush1.xpose.msra.mxu0 0.0
    %1700 = vmatprep.subr.mxu0 0.0
    %1701 = vmatpush1.xpose.msra.mxu0 0.0
    %1702 = vmatprep.subr.mxu0 0.0
    %1703 = vmatpush1.xpose.msra.mxu0 0.0
    %1704 = vmatprep.subr.mxu0 0.0
    %1705 = vmatpush1.xpose.msra.mxu0 0.0
    %1706 = vmatprep.subr.mxu0 0.0
    %1707 = vmatpush1.xpose.msra.mxu0 0.0
    %1708 = vmatprep.subr.mxu0 0.0
    %1709 = vmatpush1.xpose.msra.mxu0 0.0
    %1710 = vmatprep.subr.mxu0 0.0
    %1711 = vmatpush1.xpose.msra.mxu0 0.0
    %1712 = vmatprep.subr.mxu0 0.0
    %1713 = vmatpush1.xpose.msra.mxu0 0.0
    %1714 = vmatprep.subr.mxu0 0.0
    %1715 = vmatpush1.xpose.msra.mxu0 0.0
    %1716 = vmatprep.subr.mxu0 0.0
    %1717 = vmatpush1.xpose.msra.mxu0 0.0
    %1718 = vmatprep.subr.mxu0 0.0
    %1719 = vmatpush1.xpose.msra.mxu0 0.0
    %1720 = vmatprep.subr.mxu0 0.0
    %1721 = vmatpush1.xpose.msra.mxu0 0.0
    %1722 = vmatprep.subr.mxu0 0.0
    %1723 = vmatpush1.xpose.msra.mxu0 0.0
    %1724 = vmatprep.subr.mxu0 0.0
    %1725 = vmatpush1.xpose.msra.mxu0 0.0
    %1726 = vmatprep.subr.mxu0 0.0
    %1727 = vmatpush1.xpose.msra.mxu0 0.0
    %1728 = vmatprep.subr.mxu0 0.0
    %1729 = vmatpush1.xpose.msra.mxu0 0.0
    %1730 = vmatprep.subr.mxu0 0.0
    %1731 = vmatpush1.xpose.msra.mxu0 0.0
    %1732 = vmatprep.subr.mxu0 0.0
    %1733 = vmatpush1.xpose.msra.mxu0 0.0
    %1734 = vmatprep.subr.mxu0 0.0
    %1735 = vmatpush1.xpose.msra.mxu0 0.0
    %1736 = vmatprep.subr.mxu0 0.0
    %1737 = vmatpush1.xpose.msra.mxu0 0.0
    %1738 = vmatprep.subr.mxu0 0.0
    %1739 = vmatpush1.xpose.msra.mxu0 0.0
    %1740 = vmatprep.subr.mxu0 0.0
    %1741 = vmatpush1.xpose.msra.mxu0 0.0
    %1742 = vmatprep.subr.mxu0 0.0
    %1743 = vmatpush1.xpose.msra.mxu0 0.0
    %1744 = vmatprep.subr.mxu0 0.0
    %1745 = vmatpush1.xpose.msra.mxu0 0.0
    %1746 = vmatprep.subr.mxu0 0.0
    %1747 = vmatpush1.xpose.msra.mxu0 0.0
    %1748 = vmatprep.subr.mxu0 0.0
    %1749 = vmatpush1.xpose.msra.mxu0 0.0
    %1750 = vmatprep.subr.mxu0 0.0
    %1751 = vmatpush1.xpose.msra.mxu0 0.0
    %1752 = vmatprep.subr.mxu0 0.0
    %1753 = vmatpush1.xpose.msra.mxu0 0.0
    %1754 = vmatprep.subr.mxu0 0.0
    %1755 = vmatpush1.xpose.msra.mxu0 0.0
    %1756 = vmatprep.mubr.f32.mxu0 0.0
    %1757 = vmatmul.mubr.f32.gmra.mrb[0].mxu0 %v1687
    %v1758 = vpop.f32.mrb[0].mxu0
    %v1759 = vadd.f32 0.0, %v1758
    %v1760 = vpop.f32.mrb[0].mxu0
    %1761 = vdwg.mxu0
    %v1762 = vmul.f32 %v1227, 0.35355338
    %v1763 = vmul.f32 %v1303, 0.35355338
    %v1764 = vmul.f32 %v1379, 0.35355338
    %v1765 = vmul.f32 %v1455, 0.35355338
    %v1766 = vmul.f32 %v1531, 0.35355338
    %v1767 = vmul.f32 %v1607, 0.35355338
    %v1768 = vmul.f32 %v1683, 0.35355338
    %v1769 = vmul.f32 %v1759, 0.35355338
    %vm1770 = vcmp.eq.f32.partialorder %v28, 0.0
    %vm1771 = vcmp.eq.f32.partialorder %v29, 0.0
    %v1772 = vsel %vm1770, 1, 0
    %v1773 = vsel %vm1771, 1, 0
    %v1774 = vlaneseq
    %v1775 = vshrl.u32 %v1774, 7
    %v1776 = vsub.s32 0, %v1775
    %v1777 = vrot.slane %v1772, %v1776
    %v1778 = vlaneseq
    %v1779 = vshrl.u32 %v1778, 7
    %v1780 = vsub.s32 0, %v1779
    %v1781 = vrot.slane %v1773, %v1780
    %vm1782 = vcmp.eq.s32.totalorder %v1777, 1
    %vm1783 = vcmp.eq.s32.totalorder %v1781, 1
    %v1784 = vsel %vm1782, -1e+09, %v1762
    %v1785 = vsel %vm1782, -1e+09, %v1763
    %v1786 = vsel %vm1782, -1e+09, %v1764
    %v1787 = vsel %vm1782, -1e+09, %v1765
    %v1788 = vsel %vm1783, -1e+09, %v1766
    %v1789 = vsel %vm1783, -1e+09, %v1767
    %v1790 = vsel %vm1783, -1e+09, %v1768
    %v1791 = vsel %vm1783, -1e+09, %v1769
    %v1792 = vsel %vm1153, %v1784, -inf
    %1793 = vmax.xlane.f32.xlu0 %v1792
    %v1794 = vpop.xlane.xlu0 %1793
    %v1795 = vsel %vm1153, %v1785, -inf
    %1796 = vmax.xlane.f32.xlu0 %v1795
    %v1797 = vpop.xlane.xlu0 %1796
    %v1798 = vsel %vm1153, %v1786, -inf
    %1799 = vmax.xlane.f32.xlu0 %v1798
    %v1800 = vpop.xlane.xlu0 %1799
    %v1801 = vsel %vm1153, %v1787, -inf
    %1802 = vmax.xlane.f32.xlu0 %v1801
    %v1803 = vpop.xlane.xlu0 %1802
    %v1804 = vsel %vm1153, %v1788, -inf
    %1805 = vmax.xlane.f32.xlu0 %v1804
    %v1806 = vpop.xlane.xlu0 %1805
    %v1807 = vsel %vm1153, %v1789, -inf
    %1808 = vmax.xlane.f32.xlu0 %v1807
    %v1809 = vpop.xlane.xlu0 %1808
    %v1810 = vsel %vm1153, %v1790, -inf
    %1811 = vmax.xlane.f32.xlu0 %v1810
    %v1812 = vpop.xlane.xlu0 %1811
    %v1813 = vsel %vm1153, %v1791, -inf
    %1814 = vmax.xlane.f32.xlu0 %v1813
    %v1815 = vpop.xlane.xlu0 %1814
    %v1816 = vsub.f32 %v1784, %v1794
    %v1817 = vsub.f32 %v1785, %v1797
    %v1818 = vsub.f32 %v1786, %v1800
    %v1819 = vsub.f32 %v1787, %v1803
    %v1820 = vsub.f32 %v1788, %v1806
    %v1821 = vsub.f32 %v1789, %v1809
    %v1822 = vsub.f32 %v1790, %v1812
    %v1823 = vsub.f32 %v1791, %v1815
    %v1824 = vmul.f32 %v1816, 1.442695
    %v1825 = vpow.pop %v1824
    %v1826 = vmul.f32 %v1817, 1.442695
    %v1827 = vpow.pop %v1826
    %v1828 = vmul.f32 %v1818, 1.442695
    %v1829 = vpow.pop %v1828
    %v1830 = vmul.f32 %v1819, 1.442695
    %v1831 = vpow.pop %v1830
    %v1832 = vmul.f32 %v1820, 1.442695
    %v1833 = vpow.pop %v1832
    %v1834 = vmul.f32 %v1821, 1.442695
    %v1835 = vpow.pop %v1834
    %v1836 = vmul.f32 %v1822, 1.442695
    %v1837 = vpow.pop %v1836
    %v1838 = vmul.f32 %v1823, 1.442695
    %v1839 = vpow.pop %v1838
    %v1840 = vsel %vm1153, %v1825, 0.0
    %1841 = vadd.xlane.f32.xlu0 %v1840
    %v1842 = vpop.xlane.xlu0 %1841
    %v1843 = vsel %vm1153, %v1827, 0.0
    %1844 = vadd.xlane.f32.xlu0 %v1843
    %v1845 = vpop.xlane.xlu0 %1844
    %v1846 = vsel %vm1153, %v1829, 0.0
    %1847 = vadd.xlane.f32.xlu0 %v1846
    %v1848 = vpop.xlane.xlu0 %1847
    %v1849 = vsel %vm1153, %v1831, 0.0
    %1850 = vadd.xlane.f32.xlu0 %v1849
    %v1851 = vpop.xlane.xlu0 %1850
    %v1852 = vsel %vm1153, %v1833, 0.0
    %1853 = vadd.xlane.f32.xlu0 %v1852
    %v1854 = vpop.xlane.xlu0 %1853
    %v1855 = vsel %vm1153, %v1835, 0.0
    %1856 = vadd.xlane.f32.xlu0 %v1855
    %v1857 = vpop.xlane.xlu0 %1856
    %v1858 = vsel %vm1153, %v1837, 0.0
    %1859 = vadd.xlane.f32.xlu0 %v1858
    %v1860 = vpop.xlane.xlu0 %1859
    %v1861 = vsel %vm1153, %v1839, 0.0
    %1862 = vadd.xlane.f32.xlu0 %v1861
    %v1863 = vpop.xlane.xlu0 %1862
    %v1864 = vrcp.pop %v1842
    %v1865 = vmul.f32 %v1825, %v1864
    %v1866 = vrcp.pop %v1845
    %v1867 = vmul.f32 %v1827, %v1866
    %v1868 = vrcp.pop %v1848
    %v1869 = vmul.f32 %v1829, %v1868
    %v1870 = vrcp.pop %v1851
    %v1871 = vmul.f32 %v1831, %v1870
    %v1872 = vrcp.pop %v1854
    %v1873 = vmul.f32 %v1833, %v1872
    %v1874 = vrcp.pop %v1857
    %v1875 = vmul.f32 %v1835, %v1874
    %v1876 = vrcp.pop %v1860
    %v1877 = vmul.f32 %v1837, %v1876
    %v1878 = vrcp.pop %v1863
    %v1879 = vmul.f32 %v1839, %v1878
    %v1881 = vsel %vm1153, %v1865, 0
    %1883 = vmatprep.subr.mxu0 0.0
    %1884 = vmatpush1.msra.mxu0 %v1081
    %1885 = vmatprep.subr.mxu0 0.0
    %1886 = vmatpush1.msra.mxu0 0.0
    %1887 = vmatprep.subr.mxu0 0.0
    %1888 = vmatpush1.msra.mxu0 0.0
    %1889 = vmatprep.subr.mxu0 0.0
    %1890 = vmatpush1.msra.mxu0 0.0
    %1891 = vmatprep.subr.mxu0 0.0
    %1892 = vmatpush1.msra.mxu0 0.0
    %1893 = vmatprep.subr.mxu0 0.0
    %1894 = vmatpush1.msra.mxu0 0.0
    %1895 = vmatprep.subr.mxu0 0.0
    %1896 = vmatpush1.msra.mxu0 0.0
    %1897 = vmatprep.subr.mxu0 0.0
    %1898 = vmatpush1.msra.mxu0 0.0
    %1899 = vmatprep.subr.mxu0 0.0
    %1900 = vmatpush1.msra.mxu0 0.0
    %1901 = vmatprep.subr.mxu0 0.0
    %1902 = vmatpush1.msra.mxu0 0.0
    %1903 = vmatprep.subr.mxu0 0.0
    %1904 = vmatpush1.msra.mxu0 0.0
    %1905 = vmatprep.subr.mxu0 0.0
    %1906 = vmatpush1.msra.mxu0 0.0
    %1907 = vmatprep.subr.mxu0 0.0
    %1908 = vmatpush1.msra.mxu0 0.0
    %1909 = vmatprep.subr.mxu0 0.0
    %1910 = vmatpush1.msra.mxu0 0.0
    %1911 = vmatprep.subr.mxu0 0.0
    %1912 = vmatpush1.msra.mxu0 0.0
    %1913 = vmatprep.subr.mxu0 0.0
    %1914 = vmatpush1.msra.mxu0 0.0
    %1915 = vmatprep.subr.mxu0 0.0
    %1916 = vmatpush1.msra.mxu0 0.0
    %1917 = vmatprep.subr.mxu0 0.0
    %1918 = vmatpush1.msra.mxu0 0.0
    %1919 = vmatprep.subr.mxu0 0.0
    %1920 = vmatpush1.msra.mxu0 0.0
    %1921 = vmatprep.subr.mxu0 0.0
    %1922 = vmatpush1.msra.mxu0 0.0
    %1923 = vmatprep.subr.mxu0 0.0
    %1924 = vmatpush1.msra.mxu0 0.0
    %1925 = vmatprep.subr.mxu0 0.0
    %1926 = vmatpush1.msra.mxu0 0.0
    %1927 = vmatprep.subr.mxu0 0.0
    %1928 = vmatpush1.msra.mxu0 0.0
    %1929 = vmatprep.subr.mxu0 0.0
    %1930 = vmatpush1.msra.mxu0 0.0
    %1931 = vmatprep.subr.mxu0 0.0
    %1932 = vmatpush1.msra.mxu0 0.0
    %1933 = vmatprep.subr.mxu0 0.0
    %1934 = vmatpush1.msra.mxu0 0.0
    %1935 = vmatprep.subr.mxu0 0.0
    %1936 = vmatpush1.msra.mxu0 0.0
    %1937 = vmatprep.subr.mxu0 0.0
    %1938 = vmatpush1.msra.mxu0 0.0
    %1939 = vmatprep.subr.mxu0 0.0
    %1940 = vmatpush1.msra.mxu0 0.0
    %1941 = vmatprep.subr.mxu0 0.0
    %1942 = vmatpush1.msra.mxu0 0.0
    %1943 = vmatprep.subr.mxu0 0.0
    %1944 = vmatpush1.msra.mxu0 0.0
    %1945 = vmatprep.subr.mxu0 0.0
    %1946 = vmatpush1.msra.mxu0 0.0
    %1947 = vmatprep.mubr.f32.mxu0 0.0
    %1948 = vmatmul.mubr.f32.gmra.mrb[0].mxu0 %v1881
    %v1949 = vpop.f32.mrb[0].mxu0
    %v1950 = vadd.f32 0.0, %v1949
    %v1951 = vpop.f32.mrb[0].mxu0
    %1952 = vdwg.mxu0
    %v1954 = vsel %vm1153, %v1867, 0
    %1956 = vmatprep.subr.mxu0 0.0
    %1957 = vmatpush1.msra.mxu0 %v1082
    %1958 = vmatprep.subr.mxu0 0.0
    %1959 = vmatpush1.msra.mxu0 0.0
    %1960 = vmatprep.subr.mxu0 0.0
    %1961 = vmatpush1.msra.mxu0 0.0
    %1962 = vmatprep.subr.mxu0 0.0
    %1963 = vmatpush1.msra.mxu0 0.0
    %1964 = vmatprep.subr.mxu0 0.0
    %1965 = vmatpush1.msra.mxu0 0.0
    %1966 = vmatprep.subr.mxu0 0.0
    %1967 = vmatpush1.msra.mxu0 0.0
    %1968 = vmatprep.subr.mxu0 0.0
    %1969 = vmatpush1.msra.mxu0 0.0
    %1970 = vmatprep.subr.mxu0 0.0
    %1971 = vmatpush1.msra.mxu0 0.0
    %1972 = vmatprep.subr.mxu0 0.0
    %1973 = vmatpush1.msra.mxu0 0.0
    %1974 = vmatprep.subr.mxu0 0.0
    %1975 = vmatpush1.msra.mxu0 0.0
    %1976 = vmatprep.subr.mxu0 0.0
    %1977 = vmatpush1.msra.mxu0 0.0
    %1978 = vmatprep.subr.mxu0 0.0
    %1979 = vmatpush1.msra.mxu0 0.0
    %1980 = vmatprep.subr.mxu0 0.0
    %1981 = vmatpush1.msra.mxu0 0.0
    %1982 = vmatprep.subr.mxu0 0.0
    %1983 = vmatpush1.msra.mxu0 0.0
    %1984 = vmatprep.subr.mxu0 0.0
    %1985 = vmatpush1.msra.mxu0 0.0
    %1986 = vmatprep.subr.mxu0 0.0
    %1987 = vmatpush1.msra.mxu0 0.0
    %1988 = vmatprep.subr.mxu0 0.0
    %1989 = vmatpush1.msra.mxu0 0.0
    %1990 = vmatprep.subr.mxu0 0.0
    %1991 = vmatpush1.msra.mxu0 0.0
    %1992 = vmatprep.subr.mxu0 0.0
    %1993 = vmatpush1.msra.mxu0 0.0
    %1994 = vmatprep.subr.mxu0 0.0
    %1995 = vmatpush1.msra.mxu0 0.0
    %1996 = vmatprep.subr.mxu0 0.0
    %1997 = vmatpush1.msra.mxu0 0.0
    %1998 = vmatprep.subr.mxu0 0.0
    %1999 = vmatpush1.msra.mxu0 0.0
    %2000 = vmatprep.subr.mxu0 0.0
    %2001 = vmatpush1.msra.mxu0 0.0
    %2002 = vmatprep.subr.mxu0 0.0
    %2003 = vmatpush1.msra.mxu0 0.0
    %2004 = vmatprep.subr.mxu0 0.0
    %2005 = vmatpush1.msra.mxu0 0.0
    %2006 = vmatprep.subr.mxu0 0.0
    %2007 = vmatpush1.msra.mxu0 0.0
    %2008 = vmatprep.subr.mxu0 0.0
    %2009 = vmatpush1.msra.mxu0 0.0
    %2010 = vmatprep.subr.mxu0 0.0
    %2011 = vmatpush1.msra.mxu0 0.0
    %2012 = vmatprep.subr.mxu0 0.0
    %2013 = vmatpush1.msra.mxu0 0.0
    %2014 = vmatprep.subr.mxu0 0.0
    %2015 = vmatpush1.msra.mxu0 0.0
    %2016 = vmatprep.subr.mxu0 0.0
    %2017 = vmatpush1.msra.mxu0 0.0
    %2018 = vmatprep.subr.mxu0 0.0
    %2019 = vmatpush1.msra.mxu0 0.0
    %2020 = vmatprep.mubr.f32.mxu0 0.0
    %2021 = vmatmul.mubr.f32.gmra.mrb[0].mxu0 %v1954
    %v2022 = vpop.f32.mrb[0].mxu0
    %v2023 = vadd.f32 0.0, %v2022
    %v2024 = vpop.f32.mrb[0].mxu0
    %2025 = vdwg.mxu0
    %v2027 = vsel %vm1153, %v1869, 0
    %2029 = vmatprep.subr.mxu0 0.0
    %2030 = vmatpush1.msra.mxu0 %v1083
    %2031 = vmatprep.subr.mxu0 0.0
    %2032 = vmatpush1.msra.mxu0 0.0
    %2033 = vmatprep.subr.mxu0 0.0
    %2034 = vmatpush1.msra.mxu0 0.0
    %2035 = vmatprep.subr.mxu0 0.0
    %2036 = vmatpush1.msra.mxu0 0.0
    %2037 = vmatprep.subr.mxu0 0.0
    %2038 = vmatpush1.msra.mxu0 0.0
    %2039 = vmatprep.subr.mxu0 0.0
    %2040 = vmatpush1.msra.mxu0 0.0
    %2041 = vmatprep.subr.mxu0 0.0
    %2042 = vmatpush1.msra.mxu0 0.0
    %2043 = vmatprep.subr.mxu0 0.0
    %2044 = vmatpush1.msra.mxu0 0.0
    %2045 = vmatprep.subr.mxu0 0.0
    %2046 = vmatpush1.msra.mxu0 0.0
    %2047 = vmatprep.subr.mxu0 0.0
    %2048 = vmatpush1.msra.mxu0 0.0
    %2049 = vmatprep.subr.mxu0 0.0
    %2050 = vmatpush1.msra.mxu0 0.0
    %2051 = vmatprep.subr.mxu0 0.0
    %2052 = vmatpush1.msra.mxu0 0.0
    %2053 = vmatprep.subr.mxu0 0.0
    %2054 = vmatpush1.msra.mxu0 0.0
    %2055 = vmatprep.subr.mxu0 0.0
    %2056 = vmatpush1.msra.mxu0 0.0
    %2057 = vmatprep.subr.mxu0 0.0
    %2058 = vmatpush1.msra.mxu0 0.0
    %2059 = vmatprep.subr.mxu0 0.0
    %2060 = vmatpush1.msra.mxu0 0.0
    %2061 = vmatprep.subr.mxu0 0.0
    %2062 = vmatpush1.msra.mxu0 0.0
    %2063 = vmatprep.subr.mxu0 0.0
    %2064 = vmatpush1.msra.mxu0 0.0
    %2065 = vmatprep.subr.mxu0 0.0
    %2066 = vmatpush1.msra.mxu0 0.0
    %2067 = vmatprep.subr.mxu0 0.0
    %2068 = vmatpush1.msra.mxu0 0.0
    %2069 = vmatprep.subr.mxu0 0.0
    %2070 = vmatpush1.msra.mxu0 0.0
    %2071 = vmatprep.subr.mxu0 0.0
    %2072 = vmatpush1.msra.mxu0 0.0
    %2073 = vmatprep.subr.mxu0 0.0
    %2074 = vmatpush1.msra.mxu0 0.0
    %2075 = vmatprep.subr.mxu0 0.0
    %2076 = vmatpush1.msra.mxu0 0.0
    %2077 = vmatprep.subr.mxu0 0.0
    %2078 = vmatpush1.msra.mxu0 0.0
    %2079 = vmatprep.subr.mxu0 0.0
    %2080 = vmatpush1.msra.mxu0 0.0
    %2081 = vmatprep.subr.mxu0 0.0
    %2082 = vmatpush1.msra.mxu0 0.0
    %2083 = vmatprep.subr.mxu0 0.0
    %2084 = vmatpush1.msra.mxu0 0.0
    %2085 = vmatprep.subr.mxu0 0.0
    %2086 = vmatpush1.msra.mxu0 0.0
    %2087 = vmatprep.subr.mxu0 0.0
    %2088 = vmatpush1.msra.mxu0 0.0
    %2089 = vmatprep.subr.mxu0 0.0
    %2090 = vmatpush1.msra.mxu0 0.0
    %2091 = vmatprep.subr.mxu0 0.0
    %2092 = vmatpush1.msra.mxu0 0.0
    %2093 = vmatprep.mubr.f32.mxu0 0.0
    %2094 = vmatmul.mubr.f32.gmra.mrb[0].mxu0 %v2027
    %v2095 = vpop.f32.mrb[0].mxu0
    %v2096 = vadd.f32 0.0, %v2095
    %v2097 = vpop.f32.mrb[0].mxu0
    %2098 = vdwg.mxu0
    %v2100 = vsel %vm1153, %v1871, 0
    %2102 = vmatprep.subr.mxu0 0.0
    %2103 = vmatpush1.msra.mxu0 %v1084
    %2104 = vmatprep.subr.mxu0 0.0
    %2105 = vmatpush1.msra.mxu0 0.0
    %2106 = vmatprep.subr.mxu0 0.0
    %2107 = vmatpush1.msra.mxu0 0.0
    %2108 = vmatprep.subr.mxu0 0.0
    %2109 = vmatpush1.msra.mxu0 0.0
    %2110 = vmatprep.subr.mxu0 0.0
    %2111 = vmatpush1.msra.mxu0 0.0
    %2112 = vmatprep.subr.mxu0 0.0
    %2113 = vmatpush1.msra.mxu0 0.0
    %2114 = vmatprep.subr.mxu0 0.0
    %2115 = vmatpush1.msra.mxu0 0.0
    %2116 = vmatprep.subr.mxu0 0.0
    %2117 = vmatpush1.msra.mxu0 0.0
    %2118 = vmatprep.subr.mxu0 0.0
    %2119 = vmatpush1.msra.mxu0 0.0
    %2120 = vmatprep.subr.mxu0 0.0
    %2121 = vmatpush1.msra.mxu0 0.0
    %2122 = vmatprep.subr.mxu0 0.0
    %2123 = vmatpush1.msra.mxu0 0.0
    %2124 = vmatprep.subr.mxu0 0.0
    %2125 = vmatpush1.msra.mxu0 0.0
    %2126 = vmatprep.subr.mxu0 0.0
    %2127 = vmatpush1.msra.mxu0 0.0
    %2128 = vmatprep.subr.mxu0 0.0
    %2129 = vmatpush1.msra.mxu0 0.0
    %2130 = vmatprep.subr.mxu0 0.0
    %2131 = vmatpush1.msra.mxu0 0.0
    %2132 = vmatprep.subr.mxu0 0.0
    %2133 = vmatpush1.msra.mxu0 0.0
    %2134 = vmatprep.subr.mxu0 0.0
    %2135 = vmatpush1.msra.mxu0 0.0
    %2136 = vmatprep.subr.mxu0 0.0
    %2137 = vmatpush1.msra.mxu0 0.0
    %2138 = vmatprep.subr.mxu0 0.0
    %2139 = vmatpush1.msra.mxu0 0.0
    %2140 = vmatprep.subr.mxu0 0.0
    %2141 = vmatpush1.msra.mxu0 0.0
    %2142 = vmatprep.subr.mxu0 0.0
    %2143 = vmatpush1.msra.mxu0 0.0
    %2144 = vmatprep.subr.mxu0 0.0
    %2145 = vmatpush1.msra.mxu0 0.0
    %2146 = vmatprep.subr.mxu0 0.0
    %2147 = vmatpush1.msra.mxu0 0.0
    %2148 = vmatprep.subr.mxu0 0.0
    %2149 = vmatpush1.msra.mxu0 0.0
    %2150 = vmatprep.subr.mxu0 0.0
    %2151 = vmatpush1.msra.mxu0 0.0
    %2152 = vmatprep.subr.mxu0 0.0
    %2153 = vmatpush1.msra.mxu0 0.0
    %2154 = vmatprep.subr.mxu0 0.0
    %2155 = vmatpush1.msra.mxu0 0.0
    %2156 = vmatprep.subr.mxu0 0.0
    %2157 = vmatpush1.msra.mxu0 0.0
    %2158 = vmatprep.subr.mxu0 0.0
    %2159 = vmatpush1.msra.mxu0 0.0
    %2160 = vmatprep.subr.mxu0 0.0
    %2161 = vmatpush1.msra.mxu0 0.0
    %2162 = vmatprep.subr.mxu0 0.0
    %2163 = vmatpush1.msra.mxu0 0.0
    %2164 = vmatprep.subr.mxu0 0.0
    %2165 = vmatpush1.msra.mxu0 0.0
    %2166 = vmatprep.mubr.f32.mxu0 0.0
    %2167 = vmatmul.mubr.f32.gmra.mrb[0].mxu0 %v2100
    %v2168 = vpop.f32.mrb[0].mxu0
    %v2169 = vadd.f32 0.0, %v2168
    %v2170 = vpop.f32.mrb[0].mxu0
    %2171 = vdwg.mxu0
    %v2173 = vsel %vm1153, %v1873, 0
    %2175 = vmatprep.subr.mxu0 0.0
    %2176 = vmatpush1.msra.mxu0 %v1149
    %2177 = vmatprep.subr.mxu0 0.0
    %2178 = vmatpush1.msra.mxu0 0.0
    %2179 = vmatprep.subr.mxu0 0.0
    %2180 = vmatpush1.msra.mxu0 0.0
    %2181 = vmatprep.subr.mxu0 0.0
    %2182 = vmatpush1.msra.mxu0 0.0
    %2183 = vmatprep.subr.mxu0 0.0
    %2184 = vmatpush1.msra.mxu0 0.0
    %2185 = vmatprep.subr.mxu0 0.0
    %2186 = vmatpush1.msra.mxu0 0.0
    %2187 = vmatprep.subr.mxu0 0.0
    %2188 = vmatpush1.msra.mxu0 0.0
    %2189 = vmatprep.subr.mxu0 0.0
    %2190 = vmatpush1.msra.mxu0 0.0
    %2191 = vmatprep.subr.mxu0 0.0
    %2192 = vmatpush1.msra.mxu0 0.0
    %2193 = vmatprep.subr.mxu0 0.0
    %2194 = vmatpush1.msra.mxu0 0.0
    %2195 = vmatprep.subr.mxu0 0.0
    %2196 = vmatpush1.msra.mxu0 0.0
    %2197 = vmatprep.subr.mxu0 0.0
    %2198 = vmatpush1.msra.mxu0 0.0
    %2199 = vmatprep.subr.mxu0 0.0
    %2200 = vmatpush1.msra.mxu0 0.0
    %2201 = vmatprep.subr.mxu0 0.0
    %2202 = vmatpush1.msra.mxu0 0.0
    %2203 = vmatprep.subr.mxu0 0.0
    %2204 = vmatpush1.msra.mxu0 0.0
    %2205 = vmatprep.subr.mxu0 0.0
    %2206 = vmatpush1.msra.mxu0 0.0
    %2207 = vmatprep.subr.mxu0 0.0
    %2208 = vmatpush1.msra.mxu0 0.0
    %2209 = vmatprep.subr.mxu0 0.0
    %2210 = vmatpush1.msra.mxu0 0.0
    %2211 = vmatprep.subr.mxu0 0.0
    %2212 = vmatpush1.msra.mxu0 0.0
    %2213 = vmatprep.subr.mxu0 0.0
    %2214 = vmatpush1.msra.mxu0 0.0
    %2215 = vmatprep.subr.mxu0 0.0
    %2216 = vmatpush1.msra.mxu0 0.0
    %2217 = vmatprep.subr.mxu0 0.0
    %2218 = vmatpush1.msra.mxu0 0.0
    %2219 = vmatprep.subr.mxu0 0.0
    %2220 = vmatpush1.msra.mxu0 0.0
    %2221 = vmatprep.subr.mxu0 0.0
    %2222 = vmatpush1.msra.mxu0 0.0
    %2223 = vmatprep.subr.mxu0 0.0
    %2224 = vmatpush1.msra.mxu0 0.0
    %2225 = vmatprep.subr.mxu0 0.0
    %2226 = vmatpush1.msra.mxu0 0.0
    %2227 = vmatprep.subr.mxu0 0.0
    %2228 = vmatpush1.msra.mxu0 0.0
    %2229 = vmatprep.subr.mxu0 0.0
    %2230 = vmatpush1.msra.mxu0 0.0
    %2231 = vmatprep.subr.mxu0 0.0
    %2232 = vmatpush1.msra.mxu0 0.0
    %2233 = vmatprep.subr.mxu0 0.0
    %2234 = vmatpush1.msra.mxu0 0.0
    %2235 = vmatprep.subr.mxu0 0.0
    %2236 = vmatpush1.msra.mxu0 0.0
    %2237 = vmatprep.subr.mxu0 0.0
    %2238 = vmatpush1.msra.mxu0 0.0
    %2239 = vmatprep.mubr.f32.mxu0 0.0
    %2240 = vmatmul.mubr.f32.gmra.mrb[0].mxu0 %v2173
    %v2241 = vpop.f32.mrb[0].mxu0
    %v2242 = vadd.f32 0.0, %v2241
    %v2243 = vpop.f32.mrb[0].mxu0
    %2244 = vdwg.mxu0
    %v2246 = vsel %vm1153, %v1875, 0
    %2248 = vmatprep.subr.mxu0 0.0
    %2249 = vmatpush1.msra.mxu0 %v1150
    %2250 = vmatprep.subr.mxu0 0.0
    %2251 = vmatpush1.msra.mxu0 0.0
    %2252 = vmatprep.subr.mxu0 0.0
    %2253 = vmatpush1.msra.mxu0 0.0
    %2254 = vmatprep.subr.mxu0 0.0
    %2255 = vmatpush1.msra.mxu0 0.0
    %2256 = vmatprep.subr.mxu0 0.0
    %2257 = vmatpush1.msra.mxu0 0.0
    %2258 = vmatprep.subr.mxu0 0.0
    %2259 = vmatpush1.msra.mxu0 0.0
    %2260 = vmatprep.subr.mxu0 0.0
    %2261 = vmatpush1.msra.mxu0 0.0
    %2262 = vmatprep.subr.mxu0 0.0
    %2263 = vmatpush1.msra.mxu0 0.0
    %2264 = vmatprep.subr.mxu0 0.0
    %2265 = vmatpush1.msra.mxu0 0.0
    %2266 = vmatprep.subr.mxu0 0.0
    %2267 = vmatpush1.msra.mxu0 0.0
    %2268 = vmatprep.subr.mxu0 0.0
    %2269 = vmatpush1.msra.mxu0 0.0
    %2270 = vmatprep.subr.mxu0 0.0
    %2271 = vmatpush1.msra.mxu0 0.0
    %2272 = vmatprep.subr.mxu0 0.0
    %2273 = vmatpush1.msra.mxu0 0.0
    %2274 = vmatprep.subr.mxu0 0.0
    %2275 = vmatpush1.msra.mxu0 0.0
    %2276 = vmatprep.subr.mxu0 0.0
    %2277 = vmatpush1.msra.mxu0 0.0
    %2278 = vmatprep.subr.mxu0 0.0
    %2279 = vmatpush1.msra.mxu0 0.0
    %2280 = vmatprep.subr.mxu0 0.0
    %2281 = vmatpush1.msra.mxu0 0.0
    %2282 = vmatprep.subr.mxu0 0.0
    %2283 = vmatpush1.msra.mxu0 0.0
    %2284 = vmatprep.subr.mxu0 0.0
    %2285 = vmatpush1.msra.mxu0 0.0
    %2286 = vmatprep.subr.mxu0 0.0
    %2287 = vmatpush1.msra.mxu0 0.0
    %2288 = vmatprep.subr.mxu0 0.0
    %2289 = vmatpush1.msra.mxu0 0.0
    %2290 = vmatprep.subr.mxu0 0.0
    %2291 = vmatpush1.msra.mxu0 0.0
    %2292 = vmatprep.subr.mxu0 0.0
    %2293 = vmatpush1.msra.mxu0 0.0
    %2294 = vmatprep.subr.mxu0 0.0
    %2295 = vmatpush1.msra.mxu0 0.0
    %2296 = vmatprep.subr.mxu0 0.0
    %2297 = vmatpush1.msra.mxu0 0.0
    %2298 = vmatprep.subr.mxu0 0.0
    %2299 = vmatpush1.msra.mxu0 0.0
    %2300 = vmatprep.subr.mxu0 0.0
    %2301 = vmatpush1.msra.mxu0 0.0
    %2302 = vmatprep.subr.mxu0 0.0
    %2303 = vmatpush1.msra.mxu0 0.0
    %2304 = vmatprep.subr.mxu0 0.0
    %2305 = vmatpush1.msra.mxu0 0.0
    %2306 = vmatprep.subr.mxu0 0.0
    %2307 = vmatpush1.msra.mxu0 0.0
    %2308 = vmatprep.subr.mxu0 0.0
    %2309 = vmatpush1.msra.mxu0 0.0
    %2310 = vmatprep.subr.mxu0 0.0
    %2311 = vmatpush1.msra.mxu0 0.0
    %2312 = vmatprep.mubr.f32.mxu0 0.0
    %2313 = vmatmul.mubr.f32.gmra.mrb[0].mxu0 %v2246
    %v2314 = vpop.f32.mrb[0].mxu0
    %v2315 = vadd.f32 0.0, %v2314
    %v2316 = vpop.f32.mrb[0].mxu0
    %2317 = vdwg.mxu0
    %v2319 = vsel %vm1153, %v1877, 0
    %2321 = vmatprep.subr.mxu0 0.0
    %2322 = vmatpush1.msra.mxu0 %v1151
    %2323 = vmatprep.subr.mxu0 0.0
    %2324 = vmatpush1.msra.mxu0 0.0
    %2325 = vmatprep.subr.mxu0 0.0
    %2326 = vmatpush1.msra.mxu0 0.0
    %2327 = vmatprep.subr.mxu0 0.0
    %2328 = vmatpush1.msra.mxu0 0.0
    %2329 = vmatprep.subr.mxu0 0.0
    %2330 = vmatpush1.msra.mxu0 0.0
    %2331 = vmatprep.subr.mxu0 0.0
    %2332 = vmatpush1.msra.mxu0 0.0
    %2333 = vmatprep.subr.mxu0 0.0
    %2334 = vmatpush1.msra.mxu0 0.0
    %2335 = vmatprep.subr.mxu0 0.0
    %2336 = vmatpush1.msra.mxu0 0.0
    %2337 = vmatprep.subr.mxu0 0.0
    %2338 = vmatpush1.msra.mxu0 0.0
    %2339 = vmatprep.subr.mxu0 0.0
    %2340 = vmatpush1.msra.mxu0 0.0
    %2341 = vmatprep.subr.mxu0 0.0
    %2342 = vmatpush1.msra.mxu0 0.0
    %2343 = vmatprep.subr.mxu0 0.0
    %2344 = vmatpush1.msra.mxu0 0.0
    %2345 = vmatprep.subr.mxu0 0.0
    %2346 = vmatpush1.msra.mxu0 0.0
    %2347 = vmatprep.subr.mxu0 0.0
    %2348 = vmatpush1.msra.mxu0 0.0
    %2349 = vmatprep.subr.mxu0 0.0
    %2350 = vmatpush1.msra.mxu0 0.0
    %2351 = vmatprep.subr.mxu0 0.0
    %2352 = vmatpush1.msra.mxu0 0.0
    %2353 = vmatprep.subr.mxu0 0.0
    %2354 = vmatpush1.msra.mxu0 0.0
    %2355 = vmatprep.subr.mxu0 0.0
    %2356 = vmatpush1.msra.mxu0 0.0
    %2357 = vmatprep.subr.mxu0 0.0
    %2358 = vmatpush1.msra.mxu0 0.0
    %2359 = vmatprep.subr.mxu0 0.0
    %2360 = vmatpush1.msra.mxu0 0.0
    %2361 = vmatprep.subr.mxu0 0.0
    %2362 = vmatpush1.msra.mxu0 0.0
    %2363 = vmatprep.subr.mxu0 0.0
    %2364 = vmatpush1.msra.mxu0 0.0
    %2365 = vmatprep.subr.mxu0 0.0
    %2366 = vmatpush1.msra.mxu0 0.0
    %2367 = vmatprep.subr.mxu0 0.0
    %2368 = vmatpush1.msra.mxu0 0.0
    %2369 = vmatprep.subr.mxu0 0.0
    %2370 = vmatpush1.msra.mxu0 0.0
    %2371 = vmatprep.subr.mxu0 0.0
    %2372 = vmatpush1.msra.mxu0 0.0
    %2373 = vmatprep.subr.mxu0 0.0
    %2374 = vmatpush1.msra.mxu0 0.0
    %2375 = vmatprep.subr.mxu0 0.0
    %2376 = vmatpush1.msra.mxu0 0.0
    %2377 = vmatprep.subr.mxu0 0.0
    %2378 = vmatpush1.msra.mxu0 0.0
    %2379 = vmatprep.subr.mxu0 0.0
    %2380 = vmatpush1.msra.mxu0 0.0
    %2381 = vmatprep.subr.mxu0 0.0
    %2382 = vmatpush1.msra.mxu0 0.0
    %2383 = vmatprep.subr.mxu0 0.0
    %2384 = vmatpush1.msra.mxu0 0.0
    %2385 = vmatprep.mubr.f32.mxu0 0.0
    %2386 = vmatmul.mubr.f32.gmra.mrb[0].mxu0 %v2319
    %v2387 = vpop.f32.mrb[0].mxu0
    %v2388 = vadd.f32 0.0, %v2387
    %v2389 = vpop.f32.mrb[0].mxu0
    %2390 = vdwg.mxu0
    %v2392 = vsel %vm1153, %v1879, 0
    %2394 = vmatprep.subr.mxu0 0.0
    %2395 = vmatpush1.msra.mxu0 %v1152
    %2396 = vmatprep.subr.mxu0 0.0
    %2397 = vmatpush1.msra.mxu0 0.0
    %2398 = vmatprep.subr.mxu0 0.0
    %2399 = vmatpush1.msra.mxu0 0.0
    %2400 = vmatprep.subr.mxu0 0.0
    %2401 = vmatpush1.msra.mxu0 0.0
    %2402 = vmatprep.subr.mxu0 0.0
    %2403 = vmatpush1.msra.mxu0 0.0
    %2404 = vmatprep.subr.mxu0 0.0
    %2405 = vmatpush1.msra.mxu0 0.0
    %2406 = vmatprep.subr.mxu0 0.0
    %2407 = vmatpush1.msra.mxu0 0.0
    %2408 = vmatprep.subr.mxu0 0.0
    %2409 = vmatpush1.msra.mxu0 0.0
    %2410 = vmatprep.subr.mxu0 0.0
    %2411 = vmatpush1.msra.mxu0 0.0
    %2412 = vmatprep.subr.mxu0 0.0
    %2413 = vmatpush1.msra.mxu0 0.0
    %2414 = vmatprep.subr.mxu0 0.0
    %2415 = vmatpush1.msra.mxu0 0.0
    %2416 = vmatprep.subr.mxu0 0.0
    %2417 = vmatpush1.msra.mxu0 0.0
    %2418 = vmatprep.subr.mxu0 0.0
    %2419 = vmatpush1.msra.mxu0 0.0
    %2420 = vmatprep.subr.mxu0 0.0
    %2421 = vmatpush1.msra.mxu0 0.0
    %2422 = vmatprep.subr.mxu0 0.0
    %2423 = vmatpush1.msra.mxu0 0.0
    %2424 = vmatprep.subr.mxu0 0.0
    %2425 = vmatpush1.msra.mxu0 0.0
    %2426 = vmatprep.subr.mxu0 0.0
    %2427 = vmatpush1.msra.mxu0 0.0
    %2428 = vmatprep.subr.mxu0 0.0
    %2429 = vmatpush1.msra.mxu0 0.0
    %2430 = vmatprep.subr.mxu0 0.0
    %2431 = vmatpush1.msra.mxu0 0.0
    %2432 = vmatprep.subr.mxu0 0.0
    %2433 = vmatpush1.msra.mxu0 0.0
    %2434 = vmatprep.subr.mxu0 0.0
    %2435 = vmatpush1.msra.mxu0 0.0
    %2436 = vmatprep.subr.mxu0 0.0
    %2437 = vmatpush1.msra.mxu0 0.0
    %2438 = vmatprep.subr.mxu0 0.0
    %2439 = vmatpush1.msra.mxu0 0.0
    %2440 = vmatprep.subr.mxu0 0.0
    %2441 = vmatpush1.msra.mxu0 0.0
    %2442 = vmatprep.subr.mxu0 0.0
    %2443 = vmatpush1.msra.mxu0 0.0
    %2444 = vmatprep.subr.mxu0 0.0
    %2445 = vmatpush1.msra.mxu0 0.0
    %2446 = vmatprep.subr.mxu0 0.0
    %2447 = vmatpush1.msra.mxu0 0.0
    %2448 = vmatprep.subr.mxu0 0.0
    %2449 = vmatpush1.msra.mxu0 0.0
    %2450 = vmatprep.subr.mxu0 0.0
    %2451 = vmatpush1.msra.mxu0 0.0
    %2452 = vmatprep.subr.mxu0 0.0
    %2453 = vmatpush1.msra.mxu0 0.0
    %2454 = vmatprep.subr.mxu0 0.0
    %2455 = vmatpush1.msra.mxu0 0.0
    %2456 = vmatprep.subr.mxu0 0.0
    %2457 = vmatpush1.msra.mxu0 0.0
    %2458 = vmatprep.mubr.f32.mxu0 0.0
    %2459 = vmatmul.mubr.f32.gmra.mrb[0].mxu0 %v2392
    %v2460 = vpop.f32.mrb[0].mxu0
    %v2461 = vadd.f32 0.0, %v2460
    %v2462 = vpop.f32.mrb[0].mxu0
    %2463 = vdwg.mxu0
    %v2464 = vcombine.low %v1950, %v2096
    %v2465 = vcombine.high %v1950, %v2096
    %v2467 = vunpack.c.l.s4 1983009808
    %v2468 = vunpack.c.0.s8 %v2467
    %v2469 = vlaneseq
    %v2470 = vshrl.u32 %v2469, 7
    %v2471 = vsub.s32 %v2468, %v2470
    %v2472 = vrot.slane %v2464, %v2471
    %v2474 = vunpack.c.l.s4 1983009808
    %v2475 = vunpack.c.0.s8 %v2474
    %v2476 = vlaneseq
    %v2477 = vshrl.u32 %v2476, 7
    %v2478 = vsub.s32 %v2475, %v2477
    %v2479 = vrot.slane %v2465, %v2478
    %v2480 = vcombine.low %v2023, %v2169
    %v2481 = vcombine.high %v2023, %v2169
    %v2483 = vunpack.c.l.s4 1983009808
    %v2484 = vunpack.c.0.s8 %v2483
    %v2485 = vlaneseq
    %v2486 = vshrl.u32 %v2485, 7
    %v2487 = vsub.s32 %v2484, %v2486
    %v2488 = vrot.slane %v2480, %v2487
    %v2490 = vunpack.c.l.s4 1983009808
    %v2491 = vunpack.c.0.s8 %v2490
    %v2492 = vlaneseq
    %v2493 = vshrl.u32 %v2492, 7
    %v2494 = vsub.s32 %v2491, %v2493
    %v2495 = vrot.slane %v2481, %v2494
    %v2496 = vcombine.low %v2472, %v2488
    %v2497 = vcombine.high %v2472, %v2488
    %v2499 = vunpack.c.l.s4 1934713408
    %v2500 = vunpack.c.0.s8 %v2499
    %v2501 = vlaneseq
    %v2502 = vshrl.u32 %v2501, 7
    %v2503 = vsub.s32 %v2500, %v2502
    %v2504 = vrot.slane %v2496, %v2503
    %v2506 = vunpack.c.l.s4 1934713408
    %v2507 = vunpack.c.0.s8 %v2506
    %v2508 = vlaneseq
    %v2509 = vshrl.u32 %v2508, 7
    %v2510 = vsub.s32 %v2507, %v2509
    %v2511 = vrot.slane %v2497, %v2510
    %v2512 = vcombine.low %v2479, %v2495
    %v2513 = vcombine.high %v2479, %v2495
    %v2515 = vunpack.c.l.s4 1934713408
    %v2516 = vunpack.c.0.s8 %v2515
    %v2517 = vlaneseq
    %v2518 = vshrl.u32 %v2517, 7
    %v2519 = vsub.s32 %v2516, %v2518
    %v2520 = vrot.slane %v2512, %v2519
    %v2522 = vunpack.c.l.s4 1934713408
    %v2523 = vunpack.c.0.s8 %v2522
    %v2524 = vlaneseq
    %v2525 = vshrl.u32 %v2524, 7
    %v2526 = vsub.s32 %v2523, %v2525
    %v2527 = vrot.slane %v2513, %v2526
    %v2528 = vcombine.high %v2504, 0.0
    %v2529 = vcombine.high %v2511, 0.0
    %v2530 = vcombine.high %v2520, 0.0
    %v2531 = vcombine.high %v2527, 0.0
    %v2532 = vcombine.low %v2242, %v2388
    %v2533 = vcombine.high %v2242, %v2388
    %v2535 = vunpack.c.l.s4 1983009808
    %v2536 = vunpack.c.0.s8 %v2535
    %v2537 = vlaneseq
    %v2538 = vshrl.u32 %v2537, 7
    %v2539 = vsub.s32 %v2536, %v2538
    %v2540 = vrot.slane %v2532, %v2539
    %v2542 = vunpack.c.l.s4 1983009808
    %v2543 = vunpack.c.0.s8 %v2542
    %v2544 = vlaneseq
    %v2545 = vshrl.u32 %v2544, 7
    %v2546 = vsub.s32 %v2543, %v2545
    %v2547 = vrot.slane %v2533, %v2546
    %v2548 = vcombine.low %v2315, %v2461
    %v2549 = vcombine.high %v2315, %v2461
    %v2551 = vunpack.c.l.s4 1983009808
    %v2552 = vunpack.c.0.s8 %v2551
    %v2553 = vlaneseq
    %v2554 = vshrl.u32 %v2553, 7
    %v2555 = vsub.s32 %v2552, %v2554
    %v2556 = vrot.slane %v2548, %v2555
    %v2558 = vunpack.c.l.s4 1983009808
    %v2559 = vunpack.c.0.s8 %v2558
    %v2560 = vlaneseq
    %v2561 = vshrl.u32 %v2560, 7
    %v2562 = vsub.s32 %v2559, %v2561
    %v2563 = vrot.slane %v2549, %v2562
    %v2564 = vcombine.low %v2540, %v2556
    %v2565 = vcombine.high %v2540, %v2556
    %v2567 = vunpack.c.l.s4 1934713408
    %v2568 = vunpack.c.0.s8 %v2567
    %v2569 = vlaneseq
    %v2570 = vshrl.u32 %v2569, 7
    %v2571 = vsub.s32 %v2568, %v2570
    %v2572 = vrot.slane %v2564, %v2571
    %v2574 = vunpack.c.l.s4 1934713408
    %v2575 = vunpack.c.0.s8 %v2574
    %v2576 = vlaneseq
    %v2577 = vshrl.u32 %v2576, 7
    %v2578 = vsub.s32 %v2575, %v2577
    %v2579 = vrot.slane %v2565, %v2578
    %v2580 = vcombine.low %v2547, %v2563
    %v2581 = vcombine.high %v2547, %v2563
    %v2583 = vunpack.c.l.s4 1934713408
    %v2584 = vunpack.c.0.s8 %v2583
    %v2585 = vlaneseq
    %v2586 = vshrl.u32 %v2585, 7
    %v2587 = vsub.s32 %v2584, %v2586
    %v2588 = vrot.slane %v2580, %v2587
    %v2590 = vunpack.c.l.s4 1934713408
    %v2591 = vunpack.c.0.s8 %v2590
    %v2592 = vlaneseq
    %v2593 = vshrl.u32 %v2592, 7
    %v2594 = vsub.s32 %v2591, %v2593
    %v2595 = vrot.slane %v2581, %v2594
    %v2596 = vcombine.high %v2572, 0.0
    %v2597 = vcombine.high %v2579, 0.0
    %v2598 = vcombine.high %v2588, 0.0
    %v2599 = vcombine.high %v2595, 0.0
    %v2600 = vcombine.low %v2504, %v2511
    %v2602 = vunpack.c.l.s4 1983009808
    %v2603 = vunpack.c.0.s8 %v2602
    %v2604 = vlaneseq
    %v2605 = vshrl.u32 %v2604, 7
    %v2606 = vsub.s32 %v2603, %v2605
    %v2607 = vrot.slane %v2600, %v2606
    %v2608 = vcombine.low %v2528, %v2529
    %v2610 = vunpack.c.l.s4 1983009808
    %v2611 = vunpack.c.0.s8 %v2610
    %v2612 = vlaneseq
    %v2613 = vshrl.u32 %v2612, 7
    %v2614 = vsub.s32 %v2611, %v2613
    %v2615 = vrot.slane %v2608, %v2614
    %v2616 = vcombine.low %v2520, %v2527
    %v2618 = vunpack.c.l.s4 1983009808
    %v2619 = vunpack.c.0.s8 %v2618
    %v2620 = vlaneseq
    %v2621 = vshrl.u32 %v2620, 7
    %v2622 = vsub.s32 %v2619, %v2621
    %v2623 = vrot.slane %v2616, %v2622
    %v2624 = vcombine.low %v2530, %v2531
    %v2626 = vunpack.c.l.s4 1983009808
    %v2627 = vunpack.c.0.s8 %v2626
    %v2628 = vlaneseq
    %v2629 = vshrl.u32 %v2628, 7
    %v2630 = vsub.s32 %v2627, %v2629
    %v2631 = vrot.slane %v2624, %v2630
    %v2632 = vcombine.low %v2607, %v2615
    %v2633 = vcombine.high %v2607, %v2615
    %v2635 = vunpack.c.l.s4 1934713408
    %v2636 = vunpack.c.0.s8 %v2635
    %v2637 = vlaneseq
    %v2638 = vshrl.u32 %v2637, 7
    %v2639 = vsub.s32 %v2636, %v2638
    %v2640 = vrot.slane %v2632, %v2639
    %v2642 = vunpack.c.l.s4 1934713408
    %v2643 = vunpack.c.0.s8 %v2642
    %v2644 = vlaneseq
    %v2645 = vshrl.u32 %v2644, 7
    %v2646 = vsub.s32 %v2643, %v2645
    %v2647 = vrot.slane %v2633, %v2646
    %v2648 = vcombine.low %v2623, %v2631
    %v2649 = vcombine.high %v2623, %v2631
    %v2651 = vunpack.c.l.s4 1934713408
    %v2652 = vunpack.c.0.s8 %v2651
    %v2653 = vlaneseq
    %v2654 = vshrl.u32 %v2653, 7
    %v2655 = vsub.s32 %v2652, %v2654
    %v2656 = vrot.slane %v2648, %v2655
    %v2658 = vunpack.c.l.s4 1934713408
    %v2659 = vunpack.c.0.s8 %v2658
    %v2660 = vlaneseq
    %v2661 = vshrl.u32 %v2660, 7
    %v2662 = vsub.s32 %v2659, %v2661
    %v2663 = vrot.slane %v2649, %v2662
    %v2664 = vcombine.low %v2640, %v2656
    %v2665 = vcombine.high %v2640, %v2656
    %v2666 = vcombine.low %v2647, %v2663
    %v2667 = vcombine.high %v2647, %v2663
    %v2668 = vcombine.low %v2572, %v2579
    %v2670 = vunpack.c.l.s4 1983009808
    %v2671 = vunpack.c.0.s8 %v2670
    %v2672 = vlaneseq
    %v2673 = vshrl.u32 %v2672, 7
    %v2674 = vsub.s32 %v2671, %v2673
    %v2675 = vrot.slane %v2668, %v2674
    %v2676 = vcombine.low %v2596, %v2597
    %v2678 = vunpack.c.l.s4 1983009808
    %v2679 = vunpack.c.0.s8 %v2678
    %v2680 = vlaneseq
    %v2681 = vshrl.u32 %v2680, 7
    %v2682 = vsub.s32 %v2679, %v2681
    %v2683 = vrot.slane %v2676, %v2682
    %v2684 = vcombine.low %v2588, %v2595
    %v2686 = vunpack.c.l.s4 1983009808
    %v2687 = vunpack.c.0.s8 %v2686
    %v2688 = vlaneseq
    %v2689 = vshrl.u32 %v2688, 7
    %v2690 = vsub.s32 %v2687, %v2689
    %v2691 = vrot.slane %v2684, %v2690
    %v2692 = vcombine.low %v2598, %v2599
    %v2694 = vunpack.c.l.s4 1983009808
    %v2695 = vunpack.c.0.s8 %v2694
    %v2696 = vlaneseq
    %v2697 = vshrl.u32 %v2696, 7
    %v2698 = vsub.s32 %v2695, %v2697
    %v2699 = vrot.slane %v2692, %v2698
    %v2700 = vcombine.low %v2675, %v2683
    %v2701 = vcombine.high %v2675, %v2683
    %v2703 = vunpack.c.l.s4 1934713408
    %v2704 = vunpack.c.0.s8 %v2703
    %v2705 = vlaneseq
    %v2706 = vshrl.u32 %v2705, 7
    %v2707 = vsub.s32 %v2704, %v2706
    %v2708 = vrot.slane %v2700, %v2707
    %v2710 = vunpack.c.l.s4 1934713408
    %v2711 = vunpack.c.0.s8 %v2710
    %v2712 = vlaneseq
    %v2713 = vshrl.u32 %v2712, 7
    %v2714 = vsub.s32 %v2711, %v2713
    %v2715 = vrot.slane %v2701, %v2714
    %v2716 = vcombine.low %v2691, %v2699
    %v2717 = vcombine.high %v2691, %v2699
    %v2719 = vunpack.c.l.s4 1934713408
    %v2720 = vunpack.c.0.s8 %v2719
    %v2721 = vlaneseq
    %v2722 = vshrl.u32 %v2721, 7
    %v2723 = vsub.s32 %v2720, %v2722
    %v2724 = vrot.slane %v2716, %v2723
    %v2726 = vunpack.c.l.s4 1934713408
    %v2727 = vunpack.c.0.s8 %v2726
    %v2728 = vlaneseq
    %v2729 = vshrl.u32 %v2728, 7
    %v2730 = vsub.s32 %v2727, %v2729
    %v2731 = vrot.slane %v2717, %v2730
    %v2732 = vcombine.low %v2708, %v2724
    %v2733 = vcombine.high %v2708, %v2724
    %v2734 = vcombine.low %v2715, %v2731
    %v2735 = vcombine.high %v2715, %v2731
    %2738 = vrot.lane.b32.xlu0 %v2665, 8
    %v2739 = vpop.permute.xlu0 %2738
    %2740 = vrot.lane.b32.xlu0 %v2733, 8
    %v2741 = vpop.permute.xlu0 %2740
    %2746 = vrot.lane.b32.xlu0 %v2666, 16
    %v2747 = vpop.permute.xlu0 %2746
    %2748 = vrot.lane.b32.xlu0 %v2734, 16
    %v2749 = vpop.permute.xlu0 %2748
    %2754 = vrot.lane.b32.xlu0 %v2667, 24
    %v2755 = vpop.permute.xlu0 %2754
    %2756 = vrot.lane.b32.xlu0 %v2735, 24
    %v2757 = vpop.permute.xlu0 %2756
    %v2760 = vsel %vm1153, %v2664, %v2739
    %v2761 = vsel %vm1153, %v2732, %v2741
    %vm2762 = vcmask 130048
    %v2763 = vsel %vm2762, %v2760, %v2747
    %v2764 = vsel %vm2762, %v2761, %v2749
    %vm2765 = vcmask 195584
    %v2766 = vsel %vm2765, %v2763, %v2755
    %v2767 = vsel %vm2765, %v2764, %v2757
    %v2768 = vlaneseq
    %v2769 = vshrl.u32 %v2768, 7
    %v2770 = vsub.s32 7, %v2769
    %v2771 = vrot.slane %v30, %v2770
    %2772 = vrot.lane.b32.xlu0 %v31, 32
    %v2773 = vpop.permute.xlu0 %2772
    %2774 = vrot.lane.b32.xlu0 %v32, 32
    %v2775 = vpop.permute.xlu0 %2774
    %2776 = vrot.lane.b32.xlu0 %v33, 32
    %v2777 = vpop.permute.xlu0 %2776
    %2778 = vrot.lane.b32.xlu0 %v34, 32
    %v2779 = vpop.permute.xlu0 %2778
    %v2785 = vsel %vm47, %v2766, 0
    %v2788 = vsel %vm47, %v2767, 0
    %2790 = vmatprep.subr.mxu0 0.0
    %2791 = vmatpush1.msra.mxu0 %v2773
    %2792 = vmatprep.subr.mxu0 0.0
    %2793 = vmatpush1.msra.mxu0 %v2775
    %2794 = vmatprep.subr.mxu0 0.0
    %2795 = vmatpush1.msra.mxu0 %v2777
    %2796 = vmatprep.subr.mxu0 0.0
    %2797 = vmatpush1.msra.mxu0 %v2779
    %2798 = vmatprep.subr.mxu0 0.0
    %2799 = vmatpush1.msra.mxu0 0.0
    %2800 = vmatprep.subr.mxu0 0.0
    %2801 = vmatpush1.msra.mxu0 0.0
    %2802 = vmatprep.subr.mxu0 0.0
    %2803 = vmatpush1.msra.mxu0 0.0
    %2804 = vmatprep.subr.mxu0 0.0
    %2805 = vmatpush1.msra.mxu0 0.0
    %2806 = vmatprep.subr.mxu0 0.0
    %2807 = vmatpush1.msra.mxu0 0.0
    %2808 = vmatprep.subr.mxu0 0.0
    %2809 = vmatpush1.msra.mxu0 0.0
    %2810 = vmatprep.subr.mxu0 0.0
    %2811 = vmatpush1.msra.mxu0 0.0
    %2812 = vmatprep.subr.mxu0 0.0
    %2813 = vmatpush1.msra.mxu0 0.0
    %2814 = vmatprep.subr.mxu0 0.0
    %2815 = vmatpush1.msra.mxu0 0.0
    %2816 = vmatprep.subr.mxu0 0.0
    %2817 = vmatpush1.msra.mxu0 0.0
    %2818 = vmatprep.subr.mxu0 0.0
    %2819 = vmatpush1.msra.mxu0 0.0
    %2820 = vmatprep.subr.mxu0 0.0
    %2821 = vmatpush1.msra.mxu0 0.0
    %2822 = vmatprep.subr.mxu0 0.0
    %2823 = vmatpush1.msra.mxu0 0.0
    %2824 = vmatprep.subr.mxu0 0.0
    %2825 = vmatpush1.msra.mxu0 0.0
    %2826 = vmatprep.subr.mxu0 0.0
    %2827 = vmatpush1.msra.mxu0 0.0
    %2828 = vmatprep.subr.mxu0 0.0
    %2829 = vmatpush1.msra.mxu0 0.0
    %2830 = vmatprep.subr.mxu0 0.0
    %2831 = vmatpush1.msra.mxu0 0.0
    %2832 = vmatprep.subr.mxu0 0.0
    %2833 = vmatpush1.msra.mxu0 0.0
    %2834 = vmatprep.subr.mxu0 0.0
    %2835 = vmatpush1.msra.mxu0 0.0
    %2836 = vmatprep.subr.mxu0 0.0
    %2837 = vmatpush1.msra.mxu0 0.0
    %2838 = vmatprep.subr.mxu0 0.0
    %2839 = vmatpush1.msra.mxu0 0.0
    %2840 = vmatprep.subr.mxu0 0.0
    %2841 = vmatpush1.msra.mxu0 0.0
    %2842 = vmatprep.subr.mxu0 0.0
    %2843 = vmatpush1.msra.mxu0 0.0
    %2844 = vmatprep.subr.mxu0 0.0
    %2845 = vmatpush1.msra.mxu0 0.0
    %2846 = vmatprep.subr.mxu0 0.0
    %2847 = vmatpush1.msra.mxu0 0.0
    %2848 = vmatprep.subr.mxu0 0.0
    %2849 = vmatpush1.msra.mxu0 0.0
    %2850 = vmatprep.subr.mxu0 0.0
    %2851 = vmatpush1.msra.mxu0 0.0
    %2852 = vmatprep.subr.mxu0 0.0
    %2853 = vmatpush1.msra.mxu0 0.0
    %2854 = vmatprep.mubr.f32.mxu0 0.0
    %2855 = vmatmul.mubr.f32.gmra.mrb[0].mxu0 %v2785
    %v2856 = vpop.f32.mrb[0].mxu0
    %v2857 = vadd.f32 %v2771, %v2856
    %v2858 = vpop.f32.mrb[0].mxu0
    %2859 = vmatprep.mubr.f32.mxu0 0.0
    %2860 = vmatmul.mubr.f32.gmra.mrb[0].mxu0 %v2788
    %v2861 = vpop.f32.mrb[0].mxu0
    %v2862 = vadd.f32 %v2771, %v2861
    %v2863 = vpop.f32.mrb[0].mxu0
    %2864 = vdwg.mxu0
    %v2865 = vadd.f32 %v24, %v2857
    %v2866 = vadd.f32 %v25, %v2862
    %v2867 = vsel %vm47, %v2865, 0.0
    %2868 = vadd.xlane.f32.xlu0 %v2867
    %v2869 = vpop.xlane.xlu0 %2868
    %v2870 = vsel %vm47, %v2866, 0.0
    %2871 = vadd.xlane.f32.xlu0 %v2870
    %v2872 = vpop.xlane.xlu0 %2871
    %v2873 = vmul.f32 %v2869, %v54
    %v2874 = vmul.f32 %v2872, %v54
    %v2875 = vsub.f32 %v2865, %v2873
    %v2876 = vsub.f32 %v2866, %v2874
    %v2877 = vmul.f32 %v2875, %v2875
    %v2878 = vmul.f32 %v2876, %v2876
    %v2879 = vsel %vm47, %v2877, 0.0
    %2880 = vadd.xlane.f32.xlu0 %v2879
    %v2881 = vpop.xlane.xlu0 %2880
    %v2882 = vsel %vm47, %v2878, 0.0
    %2883 = vadd.xlane.f32.xlu0 %v2882
    %v2884 = vpop.xlane.xlu0 %2883
    %v2885 = vmul.f32 %v2881, %v54
    %v2886 = vmul.f32 %v2884, %v54
    %v2887 = vadd.f32 %v2885, 1e-05
    %v2888 = vadd.f32 %v2886, 1e-05
    %v2889 = vrsqrt.pop %v2887
    %v2890 = vrsqrt.pop %v2888
    %v2891 = vmul.f32 %v2875, %v2889
    %v2892 = vmul.f32 %v2876, %v2890
    %v2893 = vlaneseq
    %v2894 = vshrl.u32 %v2893, 7
    %v2895 = vsub.s32 2, %v2894
    %v2896 = vrot.slane %v30, %v2895
    %v2897 = vmul.f32 %v2891, %v2896
    %v2898 = vmul.f32 %v2892, %v2896
    %v2899 = vlaneseq
    %v2900 = vshrl.u32 %v2899, 7
    %v2901 = vsub.s32 3, %v2900
    %v2902 = vrot.slane %v30, %v2901
    %v2903 = vadd.f32 %v2897, %v2902
    %v2904 = vadd.f32 %v2898, %v2902
    %v2905 = vlaneseq
    %v2906 = vshrl.u32 %v2905, 7
    %v2907 = vsub.s32 6, %v2906
    %v2908 = vrot.slane %v30, %v2907
    %v2910 = vsel %vm47, %v2903, 0
    %v2913 = vsel %vm47, %v2904, 0
    %2915 = vmatprep.subr.mxu0 0.0
    %2916 = vmatpush1.msra.mxu0 %v35
    %2917 = vmatprep.subr.mxu0 0.0
    %2918 = vmatpush1.msra.mxu0 %v36
    %2919 = vmatprep.subr.mxu0 0.0
    %2920 = vmatpush1.msra.mxu0 %v37
    %2921 = vmatprep.subr.mxu0 0.0
    %2922 = vmatpush1.msra.mxu0 %v38
    %2923 = vmatprep.subr.mxu0 0.0
    %2924 = vmatpush1.msra.mxu0 0.0
    %2925 = vmatprep.subr.mxu0 0.0
    %2926 = vmatpush1.msra.mxu0 0.0
    %2927 = vmatprep.subr.mxu0 0.0
    %2928 = vmatpush1.msra.mxu0 0.0
    %2929 = vmatprep.subr.mxu0 0.0
    %2930 = vmatpush1.msra.mxu0 0.0
    %2931 = vmatprep.subr.mxu0 0.0
    %2932 = vmatpush1.msra.mxu0 0.0
    %2933 = vmatprep.subr.mxu0 0.0
    %2934 = vmatpush1.msra.mxu0 0.0
    %2935 = vmatprep.subr.mxu0 0.0
    %2936 = vmatpush1.msra.mxu0 0.0
    %2937 = vmatprep.subr.mxu0 0.0
    %2938 = vmatpush1.msra.mxu0 0.0
    %2939 = vmatprep.subr.mxu0 0.0
    %2940 = vmatpush1.msra.mxu0 0.0
    %2941 = vmatprep.subr.mxu0 0.0
    %2942 = vmatpush1.msra.mxu0 0.0
    %2943 = vmatprep.subr.mxu0 0.0
    %2944 = vmatpush1.msra.mxu0 0.0
    %2945 = vmatprep.subr.mxu0 0.0
    %2946 = vmatpush1.msra.mxu0 0.0
    %2947 = vmatprep.subr.mxu0 0.0
    %2948 = vmatpush1.msra.mxu0 0.0
    %2949 = vmatprep.subr.mxu0 0.0
    %2950 = vmatpush1.msra.mxu0 0.0
    %2951 = vmatprep.subr.mxu0 0.0
    %2952 = vmatpush1.msra.mxu0 0.0
    %2953 = vmatprep.subr.mxu0 0.0
    %2954 = vmatpush1.msra.mxu0 0.0
    %2955 = vmatprep.subr.mxu0 0.0
    %2956 = vmatpush1.msra.mxu0 0.0
    %2957 = vmatprep.subr.mxu0 0.0
    %2958 = vmatpush1.msra.mxu0 0.0
    %2959 = vmatprep.subr.mxu0 0.0
    %2960 = vmatpush1.msra.mxu0 0.0
    %2961 = vmatprep.subr.mxu0 0.0
    %2962 = vmatpush1.msra.mxu0 0.0
    %2963 = vmatprep.subr.mxu0 0.0
    %2964 = vmatpush1.msra.mxu0 0.0
    %2965 = vmatprep.subr.mxu0 0.0
    %2966 = vmatpush1.msra.mxu0 0.0
    %2967 = vmatprep.subr.mxu0 0.0
    %2968 = vmatpush1.msra.mxu0 0.0
    %2969 = vmatprep.subr.mxu0 0.0
    %2970 = vmatpush1.msra.mxu0 0.0
    %2971 = vmatprep.subr.mxu0 0.0
    %2972 = vmatpush1.msra.mxu0 0.0
    %2973 = vmatprep.subr.mxu0 0.0
    %2974 = vmatpush1.msra.mxu0 0.0
    %2975 = vmatprep.subr.mxu0 0.0
    %2976 = vmatpush1.msra.mxu0 0.0
    %2977 = vmatprep.subr.mxu0 0.0
    %2978 = vmatpush1.msra.mxu0 0.0
    %2979 = vmatprep.mubr.f32.mxu0 0.0
    %2980 = vmatmul.mubr.f32.gmra.mrb[0].mxu0 %v2910
    %v2981 = vpop.f32.mrb[0].mxu0
    %v2982 = vadd.f32 %v2908, %v2981
    %v2983 = vpop.f32.mrb[0].mxu0
    %2984 = vmatprep.mubr.f32.mxu0 0.0
    %2985 = vmatmul.mubr.f32.gmra.mrb[0].mxu0 %v2913
    %v2986 = vpop.f32.mrb[0].mxu0
    %v2987 = vadd.f32 %v2908, %v2986
    %v2988 = vpop.f32.mrb[0].mxu0
    %2989 = vdwg.mxu0
    %v2990 = vmax.f32 %v2982, 0.0
    %v2991 = vmax.f32 %v2987, 0.0
    %2993 = vrot.lane.b32.xlu0 %v2771, 96
    %v2994 = vpop.permute.xlu0 %2993
    %vm2996 = vcmask 523264
    %v2998 = vsel %vm2996, %v2990, 0
    %v3001 = vsel %vm2996, %v2991, 0
    %3003 = vmatprep.subr.mxu0 0.0
    %3004 = vmatpush1.msra.mxu0 %v39
    %3005 = vmatprep.subr.mxu0 0.0
    %3006 = vmatpush1.msra.mxu0 %v40
    %3007 = vmatprep.subr.mxu0 0.0
    %3008 = vmatpush1.msra.mxu0 %v41
    %3009 = vmatprep.subr.mxu0 0.0
    %3010 = vmatpush1.msra.mxu0 %v42
    %3011 = vmatprep.subr.mxu0 0.0
    %3012 = vmatpush1.msra.mxu0 %v43
    %3013 = vmatprep.subr.mxu0 0.0
    %3014 = vmatpush1.msra.mxu0 %v44
    %3015 = vmatprep.subr.mxu0 0.0
    %3016 = vmatpush1.msra.mxu0 %v45
    %3017 = vmatprep.subr.mxu0 0.0
    %3018 = vmatpush1.msra.mxu0 %v46
    %3019 = vmatprep.subr.mxu0 0.0
    %3020 = vmatpush1.msra.mxu0 0.0
    %3021 = vmatprep.subr.mxu0 0.0
    %3022 = vmatpush1.msra.mxu0 0.0
    %3023 = vmatprep.subr.mxu0 0.0
    %3024 = vmatpush1.msra.mxu0 0.0
    %3025 = vmatprep.subr.mxu0 0.0
    %3026 = vmatpush1.msra.mxu0 0.0
    %3027 = vmatprep.subr.mxu0 0.0
    %3028 = vmatpush1.msra.mxu0 0.0
    %3029 = vmatprep.subr.mxu0 0.0
    %3030 = vmatpush1.msra.mxu0 0.0
    %3031 = vmatprep.subr.mxu0 0.0
    %3032 = vmatpush1.msra.mxu0 0.0
    %3033 = vmatprep.subr.mxu0 0.0
    %3034 = vmatpush1.msra.mxu0 0.0
    %3035 = vmatprep.subr.mxu0 0.0
    %3036 = vmatpush1.msra.mxu0 0.0
    %3037 = vmatprep.subr.mxu0 0.0
    %3038 = vmatpush1.msra.mxu0 0.0
    %3039 = vmatprep.subr.mxu0 0.0
    %3040 = vmatpush1.msra.mxu0 0.0
    %3041 = vmatprep.subr.mxu0 0.0
    %3042 = vmatpush1.msra.mxu0 0.0
    %3043 = vmatprep.subr.mxu0 0.0
    %3044 = vmatpush1.msra.mxu0 0.0
    %3045 = vmatprep.subr.mxu0 0.0
    %3046 = vmatpush1.msra.mxu0 0.0
    %3047 = vmatprep.subr.mxu0 0.0
    %3048 = vmatpush1.msra.mxu0 0.0
    %3049 = vmatprep.subr.mxu0 0.0
    %3050 = vmatpush1.msra.mxu0 0.0
    %3051 = vmatprep.subr.mxu0 0.0
    %3052 = vmatpush1.msra.mxu0 0.0
    %3053 = vmatprep.subr.mxu0 0.0
    %3054 = vmatpush1.msra.mxu0 0.0
    %3055 = vmatprep.subr.mxu0 0.0
    %3056 = vmatpush1.msra.mxu0 0.0
    %3057 = vmatprep.subr.mxu0 0.0
    %3058 = vmatpush1.msra.mxu0 0.0
    %3059 = vmatprep.subr.mxu0 0.0
    %3060 = vmatpush1.msra.mxu0 0.0
    %3061 = vmatprep.subr.mxu0 0.0
    %3062 = vmatpush1.msra.mxu0 0.0
    %3063 = vmatprep.subr.mxu0 0.0
    %3064 = vmatpush1.msra.mxu0 0.0
    %3065 = vmatprep.subr.mxu0 0.0
    %3066 = vmatpush1.msra.mxu0 0.0
    %3067 = vmatprep.mubr.f32.mxu0 0.0
    %3068 = vmatmul.mubr.f32.gmra.mrb[0].mxu0 %v2998
    %v3069 = vpop.f32.mrb[0].mxu0
    %v3070 = vadd.f32 %v2994, %v3069
    %v3071 = vpop.f32.mrb[0].mxu0
    %3072 = vmatprep.mubr.f32.mxu0 0.0
    %3073 = vmatmul.mubr.f32.gmra.mrb[0].mxu0 %v3001
    %v3074 = vpop.f32.mrb[0].mxu0
    %v3075 = vadd.f32 %v2994, %v3074
    %v3076 = vpop.f32.mrb[0].mxu0
    %3077 = vdwg.mxu0
    %v3078 = vadd.f32 %v2865, %v3070
    %v3079 = vadd.f32 %v2866, %v3075
    %3080 = vst.msk [vmem:[#allocation2] sm:$0xff] %vm47, %v3078
    %3081 = vst.msk [vmem:[#allocation2 + $0x8] sm:$0xff] %vm47, %v3079
    // Predicated region
    $region26: #{tpu_custom_call.1} parent=1 // pred_check
      _
    $region27: #{tpu_custom_call.1} parent=1 // pred_check_branch
      %3083 = sbr.rel (0) target = $region29
    $region28: #{tpu_custom_call.1} parent=1 // pred_region
      %s3085 = ssub.s32 256, 256
      %3086 = vsyncadd [#allocation3], %s3085
      %s3087 = sshll.u32 [#allocation2], 4
      %s3088 = int_to_ptr.vmem [resolvable:$true] %s3087
      %3093 = dma.vmem_to_hbm [thread:$0]  %s3088, 256, %s6, [#allocation3], 128, 128, 8
    $region29: #{tpu_custom_call.1} parent=1 // pred_fallthru
      _
    // Predicated region
    $region30: #{tpu_custom_call.1} parent=1 // pred_check
      _
    $region31: #{tpu_custom_call.1} parent=1 // pred_check_branch
      %3095 = sbr.rel (0) target = $region33
    $region32: #{tpu_custom_call.1} parent=1 // pred_region
      %3096 = dma.done [#allocation3], 256
    $region33: #{tpu_custom_call.1} parent=1 // pred_fallthru
      _
    %3097 = vsyncpa [#allocation3], 1

</llo_original>
